<compile_context>
chip_gen: v7x
topology: tpu7x:2x2x1
jax: 0.10.0
libtpu: 0.0.40
codegen_flags: <defaults>
</compile_context>

<pallas_src>
import functools

import jax
import jax.numpy as jnp
import numpy as np
from jax.experimental import pallas as pl
from jax.experimental.pallas import tpu as pltpu

HIDDEN = 64


def _qnet_kernel(T, Bp, H,
                 xr_ref, w1_ref, b1_ref, wih_ref, whh_ref, bg_ref,
                 w2_ref, b2_ref, h0_ref, c0_ref,
                 out_ref, hn_ref, cn_ref,
                 pre_scr, hseq_scr):
    # ---- Linear1 + ReLU over all (t, b) rows at once ----------------------
    h1 = jnp.maximum(
        jnp.dot(xr_ref[...], w1_ref[...], preferred_element_type=jnp.float32)
        + b1_ref[...],
        0.0,
    )

    # ---- Precompute x-side of all 4 gates for ALL timesteps ---------------
    # pre_gates[r, :] = h1[r] @ [Wih_i | Wih_f | Wih_g | Wih_o] + (b_ih + b_hh)
    pre_scr[...] = (
        jnp.dot(h1, wih_ref[...], preferred_element_type=jnp.float32)
        + bg_ref[...]
    )

    # ---- LSTM recurrence: only h_prev @ W_hh left on the serial chain -----
    whh = whh_ref[...]                      # fused [H, 4H], resident
    h_prev = h0_ref[...]
    c_prev = c0_ref[...]

    for t in range(T):                      # static unroll, T is small
        gates = (pre_scr[t * Bp:(t + 1) * Bp, :]
                 + jnp.dot(h_prev, whh, preferred_element_type=jnp.float32))
        i_g = jax.nn.sigmoid(gates[:, 0 * H:1 * H])
        f_g = jax.nn.sigmoid(gates[:, 1 * H:2 * H])
        g_g = jnp.tanh(gates[:, 2 * H:3 * H])
        o_g = jax.nn.sigmoid(gates[:, 3 * H:4 * H])

        c_prev = f_g * c_prev + i_g * g_g
        h_prev = o_g * jnp.tanh(c_prev)
        hseq_scr[t * Bp:(t + 1) * Bp, :] = h_prev

    # ---- Linear2 over all timesteps at once (single lane-dense store) -----
    out_ref[...] = (
        jnp.dot(hseq_scr[...], w2_ref[...], preferred_element_type=jnp.float32)
        + b2_ref[...]
    )
    hn_ref[...] = h_prev
    cn_ref[...] = c_prev


def qnet_forward(x, rho, h, c, params):
    """Pallas implementation of Q_net.forward."""
    B, T, S = x.shape
    R = rho.shape[-1]
    H = params["w1"].shape[1]
    A = params["w2"].shape[1]

    Bp = ((B + 7) // 8) * 8          # pad batch to sublane multiple (>= 8)
    Ap = ((A + 127) // 128) * 128    # pad action dim to lane width (>= 128)

    # Glue: concat + time-major flatten + batch pad ([B,T,F] -> [T*Bp, F]).
    xr = jnp.concatenate([x, rho], axis=-1)            # [B, T, S+R]
    xr_tm = jnp.transpose(xr, (1, 0, 2))               # [T, B, S+R]
    xr_tm = jnp.pad(xr_tm, ((0, 0), (0, Bp - B), (0, 0)))
    xr_flat = xr_tm.reshape(T * Bp, S + R)

    h0 = jnp.pad(h[0], ((0, Bp - B), (0, 0)))          # [Bp, H]
    c0 = jnp.pad(c[0], ((0, Bp - B), (0, 0)))          # [Bp, H]

    # Fuse per-gate weights (PyTorch gate order i, f, g, o) along columns.
    wih_f = jnp.transpose(params["wih"], (1, 0, 2)).reshape(H, 4 * H)
    whh_f = jnp.transpose(params["whh"], (1, 0, 2)).reshape(H, 4 * H)
    bg_f = jnp.transpose(params["bg"], (1, 0, 2)).reshape(1, 4 * H)

    # Lane-pad Linear2 so the single output store is unmasked / lane-dense.
    w2_p = jnp.pad(params["w2"], ((0, 0), (0, Ap - A)))
    b2_p = jnp.pad(params["b2"], ((0, 0), (0, Ap - A)))

    kernel = functools.partial(_qnet_kernel, T, Bp, H)
    out_flat, hn, cn = pl.pallas_call(
        kernel,
        out_shape=(
            jax.ShapeDtypeStruct((T * Bp, Ap), jnp.float32),
            jax.ShapeDtypeStruct((Bp, H), jnp.float32),
            jax.ShapeDtypeStruct((Bp, H), jnp.float32),
        ),
        scratch_shapes=[
            pltpu.VMEM((T * Bp, 4 * H), jnp.float32),  # precomputed x-gates
            pltpu.VMEM((T * Bp, H), jnp.float32),      # per-step LSTM outputs
        ],
    )(xr_flat, params["w1"], params["b1"], wih_f, whh_f, bg_f,
      w2_p, b2_p, h0, c0)

    # Glue: unpad + back to [B, T, A].
    out = jnp.transpose(out_flat.reshape(T, Bp, Ap)[:, :B, :A], (1, 0, 2))
    return out, hn[:B][None], cn[:B][None]


def init_params(key, state_space, rho_space, action_space, hidden=HIDDEN):
    """Deterministic synthetic parameters (shapes match Q_net.__init__)."""
    f_in = state_space + rho_space
    ks = jax.random.split(key, 7)
    s = 0.1
    return dict(
        # Linear1: (state+rho) -> hidden, stored as [in, out]
        w1=jax.random.normal(ks[0], (f_in, hidden), jnp.float32) * s,
        b1=jax.random.normal(ks[1], (1, hidden), jnp.float32) * s,
        # LSTM per-gate weights, gate order (i, f, g, o), stored [4, in, out]
        wih=jax.random.normal(ks[2], (4, hidden, hidden), jnp.float32) * s,
        whh=jax.random.normal(ks[3], (4, hidden, hidden), jnp.float32) * s,
        bg=jax.random.normal(ks[4], (4, 1, hidden), jnp.float32) * s,  # b_ih+b_hh
        # Linear2: hidden -> action, stored as [in, out]
        w2=jax.random.normal(ks[5], (hidden, action_space), jnp.float32) * s,
        b2=jax.random.normal(ks[6], (1, action_space), jnp.float32) * s,
    )


def qnet_reference(x, rho, h, c, params):
    """Pure-JAX reference of the same forward pass (for verification)."""
    xr = jnp.concatenate([x, rho], axis=-1)
    h1 = jax.nn.relu(xr @ params["w1"] + params["b1"][0])
    B, T, H = h1.shape
    h_t, c_t = h[0], c[0]
    outs = []
    for t in range(T):
        x_t = h1[:, t, :]
        i = jax.nn.sigmoid(x_t @ params["wih"][0] + h_t @ params["whh"][0] + params["bg"][0, 0])
        f = jax.nn.sigmoid(x_t @ params["wih"][1] + h_t @ params["whh"][1] + params["bg"][1, 0])
        g = jnp.tanh(x_t @ params["wih"][2] + h_t @ params["whh"][2] + params["bg"][2, 0])
        o = jax.nn.sigmoid(x_t @ params["wih"][3] + h_t @ params["whh"][3] + params["bg"][3, 0])
        c_t = f * c_t + i * g
        h_t = o * jnp.tanh(c_t)
        outs.append(h_t @ params["w2"] + params["b2"][0])
    return jnp.stack(outs, axis=1), h_t[None], c_t[None]


# TODO(synk): sample_action (host-side python RNG / epsilon-greedy argmax) and
# init_hidden_state are host utilities, not part of the forward hot path.
# TODO(synk): if B ever grows beyond toy size, add a batch-parallel grid axis
# (dimension_semantics=("parallel",)) so v7x's second TensorCore is used.

if __name__ == "__main__":
    B, T = 2, 8
    STATE, RHO, ACT = 4, 2, 2

    key = jax.random.PRNGKey(0)
    k_x, k_r, k_p = jax.random.split(key, 3)

    x = jax.random.normal(k_x, (B, T, STATE), jnp.float32)
    rho = jax.random.normal(k_r, (B, T, RHO), jnp.float32)
    h0 = jnp.zeros((1, B, HIDDEN), jnp.float32)
    c0 = jnp.zeros((1, B, HIDDEN), jnp.float32)
    params = init_params(k_p, STATE, RHO, ACT)

    out, new_h, new_c = jax.jit(qnet_forward)(x, rho, h0, c0, params)
    jax.block_until_ready((out, new_h, new_c))

    ref_out, ref_h, ref_c = qnet_reference(x, rho, h0, c0, params)
    np.testing.assert_allclose(np.asarray(out), np.asarray(ref_out), rtol=1e-4, atol=1e-4)
    np.testing.assert_allclose(np.asarray(new_h), np.asarray(ref_h), rtol=1e-4, atol=1e-4)
    np.testing.assert_allclose(np.asarray(new_c), np.asarray(ref_c), rtol=1e-4, atol=1e-4)

    assert out.shape == (B, T, ACT) and new_h.shape == (1, B, HIDDEN) and new_c.shape == (1, B, HIDDEN)
    print("KERNEL_OK")
</pallas_src>

<mosaic_0001>
module attributes {stable_mosaic.version = 11 : i64} {
  func.func @_qnet_kernel(%arg0: memref<64x6xf32, #tpu.memory_space<vmem>>, %arg1: memref<6x64xf32, #tpu.memory_space<vmem>>, %arg2: memref<1x64xf32, #tpu.memory_space<vmem>>, %arg3: memref<64x256xf32, #tpu.memory_space<vmem>>, %arg4: memref<64x256xf32, #tpu.memory_space<vmem>>, %arg5: memref<1x256xf32, #tpu.memory_space<vmem>>, %arg6: memref<64x128xf32, #tpu.memory_space<vmem>>, %arg7: memref<1x128xf32, #tpu.memory_space<vmem>>, %arg8: memref<8x64xf32, #tpu.memory_space<vmem>>, %arg9: memref<8x64xf32, #tpu.memory_space<vmem>>, %arg10: memref<64x128xf32, #tpu.memory_space<vmem>>, %arg11: memref<8x64xf32, #tpu.memory_space<vmem>>, %arg12: memref<8x64xf32, #tpu.memory_space<vmem>>, %arg13: memref<64x256xf32, #tpu.memory_space<vmem>>, %arg14: memref<64x64xf32, #tpu.memory_space<vmem>>) attributes {dimension_semantics = [], scalar_prefetch = 0 : i64, scratch_operands = 2 : i64, tpu.core_type = #tpu.core_type<tc>} {
    %c0 = arith.constant 0 : index
    %c0_0 = arith.constant 0 : index
    %0 = vector.load %arg0[%c0, %c0_0] : memref<64x6xf32, #tpu.memory_space<vmem>>, vector<64x6xf32>
    %c0_1 = arith.constant 0 : index
    %c0_2 = arith.constant 0 : index
    %1 = vector.load %arg1[%c0_1, %c0_2] : memref<6x64xf32, #tpu.memory_space<vmem>>, vector<6x64xf32>
    %cst = arith.constant dense<0.000000e+00> : vector<64x64xf32>
    %2 = tpu.matmul %0, %1, %cst {dimension_numbers = #tpu.dot_dimension_numbers<[1], [0], [0], [1], [0, 0, 1, 1], [], []>} : vector<64x6xf32>, vector<6x64xf32>, vector<64x64xf32> -> vector<64x64xf32>
    %c0_3 = arith.constant 0 : index
    %c0_4 = arith.constant 0 : index
    %3 = vector.load %arg2[%c0_3, %c0_4] : memref<1x64xf32, #tpu.memory_space<vmem>>, vector<1x64xf32>
    %4 = vector.broadcast %3 : vector<1x64xf32> to vector<64x64xf32>
    %5 = arith.addf %2, %4 : vector<64x64xf32>
    %cst_5 = arith.constant 0.000000e+00 : f32
    %6 = vector.broadcast %cst_5 : f32 to vector<64x64xf32>
    %7 = arith.maximumf %5, %6 : vector<64x64xf32>
    %c0_6 = arith.constant 0 : index
    %c0_7 = arith.constant 0 : index
    %8 = vector.load %arg3[%c0_6, %c0_7] : memref<64x256xf32, #tpu.memory_space<vmem>>, vector<64x256xf32>
    %cst_8 = arith.constant dense<0.000000e+00> : vector<64x256xf32>
    %9 = tpu.matmul %7, %8, %cst_8 {dimension_numbers = #tpu.dot_dimension_numbers<[1], [0], [0], [1], [0, 0, 1, 1], [], []>} : vector<64x64xf32>, vector<64x256xf32>, vector<64x256xf32> -> vector<64x256xf32>
    %c0_9 = arith.constant 0 : index
    %c0_10 = arith.constant 0 : index
    %10 = vector.load %arg5[%c0_9, %c0_10] : memref<1x256xf32, #tpu.memory_space<vmem>>, vector<1x256xf32>
    %11 = vector.broadcast %10 : vector<1x256xf32> to vector<64x256xf32>
    %12 = arith.addf %9, %11 : vector<64x256xf32>
    %c0_11 = arith.constant 0 : index
    %c0_12 = arith.constant 0 : index
    %13 = vector.load %arg13[%c0_11, %c0_12] : memref<64x256xf32, #tpu.memory_space<vmem>>, vector<64x256xf32>
    tpu.vector_store %arg13[%c0_11, %c0_12], %12 {strides = array<i32>} : memref<64x256xf32, #tpu.memory_space<vmem>>, vector<64x256xf32>,
    %c0_13 = arith.constant 0 : index
    %c0_14 = arith.constant 0 : index
    %14 = vector.load %arg4[%c0_13, %c0_14] : memref<64x256xf32, #tpu.memory_space<vmem>>, vector<64x256xf32>
    %c0_15 = arith.constant 0 : index
    %c0_16 = arith.constant 0 : index
    %15 = vector.load %arg8[%c0_15, %c0_16] : memref<8x64xf32, #tpu.memory_space<vmem>>, vector<8x64xf32>
    %c0_17 = arith.constant 0 : index
    %c0_18 = arith.constant 0 : index
    %16 = vector.load %arg9[%c0_17, %c0_18] : memref<8x64xf32, #tpu.memory_space<vmem>>, vector<8x64xf32>
    %c0_19 = arith.constant 0 : index
    %c0_20 = arith.constant 0 : index
    %17 = vector.load %arg13[%c0_19, %c0_20] : memref<64x256xf32, #tpu.memory_space<vmem>>, vector<8x256xf32>
    %cst_21 = arith.constant dense<0.000000e+00> : vector<8x256xf32>
    %18 = tpu.matmul %15, %14, %cst_21 {dimension_numbers = #tpu.dot_dimension_numbers<[1], [0], [0], [1], [0, 0, 1, 1], [], []>} : vector<8x64xf32>, vector<64x256xf32>, vector<8x256xf32> -> vector<8x256xf32>
    %19 = arith.addf %17, %18 : vector<8x256xf32>
    %20 = vector.extract_strided_slice %19 {offsets = [0, 0], sizes = [8, 64], strides = [1, 1]} : vector<8x256xf32> to vector<8x64xf32>
    %21 = arith.negf %20 : vector<8x64xf32>
    %22 = math.exp %21 : vector<8x64xf32>
    %cst_22 = arith.constant 1.000000e+00 : f32
    %23 = vector.broadcast %cst_22 : f32 to vector<8x64xf32>
    %24 = arith.addf %23, %22 : vector<8x64xf32>
    %25 = arith.divf %23, %24 : vector<8x64xf32>
    %26 = vector.extract_strided_slice %19 {offsets = [0, 64], sizes = [8, 64], strides = [1, 1]} : vector<8x256xf32> to vector<8x64xf32>
    %27 = arith.negf %26 : vector<8x64xf32>
    %28 = math.exp %27 : vector<8x64xf32>
    %cst_23 = arith.constant 1.000000e+00 : f32
    %29 = vector.broadcast %cst_23 : f32 to vector<8x64xf32>
    %30 = arith.addf %29, %28 : vector<8x64xf32>
    %31 = arith.divf %29, %30 : vector<8x64xf32>
    %32 = vector.extract_strided_slice %19 {offsets = [0, 128], sizes = [8, 64], strides = [1, 1]} : vector<8x256xf32> to vector<8x64xf32>
    %33 = math.tanh %32 : vector<8x64xf32>
    %34 = vector.extract_strided_slice %19 {offsets = [0, 192], sizes = [8, 64], strides = [1, 1]} : vector<8x256xf32> to vector<8x64xf32>
    %35 = arith.negf %34 : vector<8x64xf32>
    %36 = math.exp %35 : vector<8x64xf32>
    %cst_24 = arith.constant 1.000000e+00 : f32
    %37 = vector.broadcast %cst_24 : f32 to vector<8x64xf32>
    %38 = arith.addf %37, %36 : vector<8x64xf32>
    %39 = arith.divf %37, %38 : vector<8x64xf32>
    %40 = arith.mulf %31, %16 : vector<8x64xf32>
    %41 = arith.mulf %25, %33 : vector<8x64xf32>
    %42 = arith.addf %40, %41 : vector<8x64xf32>
    %43 = math.tanh %42 : vector<8x64xf32>
    %44 = arith.mulf %39, %43 : vector<8x64xf32>
    %c0_25 = arith.constant 0 : index
    %c0_26 = arith.constant 0 : index
    %45 = vector.load %arg14[%c0_25, %c0_26] : memref<64x64xf32, #tpu.memory_space<vmem>>, vector<8x64xf32>
    tpu.vector_store %arg14[%c0_25, %c0_26], %44 {strides = array<i32>} : memref<64x64xf32, #tpu.memory_space<vmem>>, vector<8x64xf32>,
    %c8 = arith.constant 8 : index
    %c0_27 = arith.constant 0 : index
    %46 = vector.load %arg13[%c8, %c0_27] : memref<64x256xf32, #tpu.memory_space<vmem>>, vector<8x256xf32>
    %cst_28 = arith.constant dense<0.000000e+00> : vector<8x256xf32>
    %47 = tpu.matmul %44, %14, %cst_28 {dimension_numbers = #tpu.dot_dimension_numbers<[1], [0], [0], [1], [0, 0, 1, 1], [], []>} : vector<8x64xf32>, vector<64x256xf32>, vector<8x256xf32> -> vector<8x256xf32>
    %48 = arith.addf %46, %47 : vector<8x256xf32>
    %49 = vector.extract_strided_slice %48 {offsets = [0, 0], sizes = [8, 64], strides = [1, 1]} : vector<8x256xf32> to vector<8x64xf32>
    %50 = arith.negf %49 : vector<8x64xf32>
    %51 = math.exp %50 : vector<8x64xf32>
    %cst_29 = arith.constant 1.000000e+00 : f32
    %52 = vector.broadcast %cst_29 : f32 to vector<8x64xf32>
    %53 = arith.addf %52, %51 : vector<8x64xf32>
    %54 = arith.divf %52, %53 : vector<8x64xf32>
    %55 = vector.extract_strided_slice %48 {offsets = [0, 64], sizes = [8, 64], strides = [1, 1]} : vector<8x256xf32> to vector<8x64xf32>
    %56 = arith.negf %55 : vector<8x64xf32>
    %57 = math.exp %56 : vector<8x64xf32>
    %cst_30 = arith.constant 1.000000e+00 : f32
    %58 = vector.broadcast %cst_30 : f32 to vector<8x64xf32>
    %59 = arith.addf %58, %57 : vector<8x64xf32>
    %60 = arith.divf %58, %59 : vector<8x64xf32>
    %61 = vector.extract_strided_slice %48 {offsets = [0, 128], sizes = [8, 64], strides = [1, 1]} : vector<8x256xf32> to vector<8x64xf32>
    %62 = math.tanh %61 : vector<8x64xf32>
    %63 = vector.extract_strided_slice %48 {offsets = [0, 192], sizes = [8, 64], strides = [1, 1]} : vector<8x256xf32> to vector<8x64xf32>
    %64 = arith.negf %63 : vector<8x64xf32>
    %65 = math.exp %64 : vector<8x64xf32>
    %cst_31 = arith.constant 1.000000e+00 : f32
    %66 = vector.broadcast %cst_31 : f32 to vector<8x64xf32>
    %67 = arith.addf %66, %65 : vector<8x64xf32>
    %68 = arith.divf %66, %67 : vector<8x64xf32>
    %69 = arith.mulf %60, %42 : vector<8x64xf32>
    %70 = arith.mulf %54, %62 : vector<8x64xf32>
    %71 = arith.addf %69, %70 : vector<8x64xf32>
    %72 = math.tanh %71 : vector<8x64xf32>
    %73 = arith.mulf %68, %72 : vector<8x64xf32>
    %c8_32 = arith.constant 8 : index
    %c0_33 = arith.constant 0 : index
    %74 = vector.load %arg14[%c8_32, %c0_33] : memref<64x64xf32, #tpu.memory_space<vmem>>, vector<8x64xf32>
    tpu.vector_store %arg14[%c8_32, %c0_33], %73 {strides = array<i32>} : memref<64x64xf32, #tpu.memory_space<vmem>>, vector<8x64xf32>,
    %c16 = arith.constant 16 : index
    %c0_34 = arith.constant 0 : index
    %75 = vector.load %arg13[%c16, %c0_34] : memref<64x256xf32, #tpu.memory_space<vmem>>, vector<8x256xf32>
    %cst_35 = arith.constant dense<0.000000e+00> : vector<8x256xf32>
    %76 = tpu.matmul %73, %14, %cst_35 {dimension_numbers = #tpu.dot_dimension_numbers<[1], [0], [0], [1], [0, 0, 1, 1], [], []>} : vector<8x64xf32>, vector<64x256xf32>, vector<8x256xf32> -> vector<8x256xf32>
    %77 = arith.addf %75, %76 : vector<8x256xf32>
    %78 = vector.extract_strided_slice %77 {offsets = [0, 0], sizes = [8, 64], strides = [1, 1]} : vector<8x256xf32> to vector<8x64xf32>
    %79 = arith.negf %78 : vector<8x64xf32>
    %80 = math.exp %79 : vector<8x64xf32>
    %cst_36 = arith.constant 1.000000e+00 : f32
    %81 = vector.broadcast %cst_36 : f32 to vector<8x64xf32>
    %82 = arith.addf %81, %80 : vector<8x64xf32>
    %83 = arith.divf %81, %82 : vector<8x64xf32>
    %84 = vector.extract_strided_slice %77 {offsets = [0, 64], sizes = [8, 64], strides = [1, 1]} : vector<8x256xf32> to vector<8x64xf32>
    %85 = arith.negf %84 : vector<8x64xf32>
    %86 = math.exp %85 : vector<8x64xf32>
    %cst_37 = arith.constant 1.000000e+00 : f32
    %87 = vector.broadcast %cst_37 : f32 to vector<8x64xf32>
    %88 = arith.addf %87, %86 : vector<8x64xf32>
    %89 = arith.divf %87, %88 : vector<8x64xf32>
    %90 = vector.extract_strided_slice %77 {offsets = [0, 128], sizes = [8, 64], strides = [1, 1]} : vector<8x256xf32> to vector<8x64xf32>
    %91 = math.tanh %90 : vector<8x64xf32>
    %92 = vector.extract_strided_slice %77 {offsets = [0, 192], sizes = [8, 64], strides = [1, 1]} : vector<8x256xf32> to vector<8x64xf32>
    %93 = arith.negf %92 : vector<8x64xf32>
    %94 = math.exp %93 : vector<8x64xf32>
    %cst_38 = arith.constant 1.000000e+00 : f32
    %95 = vector.broadcast %cst_38 : f32 to vector<8x64xf32>
    %96 = arith.addf %95, %94 : vector<8x64xf32>
    %97 = arith.divf %95, %96 : vector<8x64xf32>
    %98 = arith.mulf %89, %71 : vector<8x64xf32>
    %99 = arith.mulf %83, %91 : vector<8x64xf32>
    %100 = arith.addf %98, %99 : vector<8x64xf32>
    %101 = math.tanh %100 : vector<8x64xf32>
    %102 = arith.mulf %97, %101 : vector<8x64xf32>
    %c16_39 = arith.constant 16 : index
    %c0_40 = arith.constant 0 : index
    %103 = vector.load %arg14[%c16_39, %c0_40] : memref<64x64xf32, #tpu.memory_space<vmem>>, vector<8x64xf32>
    tpu.vector_store %arg14[%c16_39, %c0_40], %102 {strides = array<i32>} : memref<64x64xf32, #tpu.memory_space<vmem>>, vector<8x64xf32>,
    %c24 = arith.constant 24 : index
    %c0_41 = arith.constant 0 : index
    %104 = vector.load %arg13[%c24, %c0_41] : memref<64x256xf32, #tpu.memory_space<vmem>>, vector<8x256xf32>
    %cst_42 = arith.constant dense<0.000000e+00> : vector<8x256xf32>
    %105 = tpu.matmul %102, %14, %cst_42 {dimension_numbers = #tpu.dot_dimension_numbers<[1], [0], [0], [1], [0, 0, 1, 1], [], []>} : vector<8x64xf32>, vector<64x256xf32>, vector<8x256xf32> -> vector<8x256xf32>
    %106 = arith.addf %104, %105 : vector<8x256xf32>
    %107 = vector.extract_strided_slice %106 {offsets = [0, 0], sizes = [8, 64], strides = [1, 1]} : vector<8x256xf32> to vector<8x64xf32>
    %108 = arith.negf %107 : vector<8x64xf32>
    %109 = math.exp %108 : vector<8x64xf32>
    %cst_43 = arith.constant 1.000000e+00 : f32
    %110 = vector.broadcast %cst_43 : f32 to vector<8x64xf32>
    %111 = arith.addf %110, %109 : vector<8x64xf32>
    %112 = arith.divf %110, %111 : vector<8x64xf32>
    %113 = vector.extract_strided_slice %106 {offsets = [0, 64], sizes = [8, 64], strides = [1, 1]} : vector<8x256xf32> to vector<8x64xf32>
    %114 = arith.negf %113 : vector<8x64xf32>
    %115 = math.exp %114 : vector<8x64xf32>
    %cst_44 = arith.constant 1.000000e+00 : f32
    %116 = vector.broadcast %cst_44 : f32 to vector<8x64xf32>
    %117 = arith.addf %116, %115 : vector<8x64xf32>
    %118 = arith.divf %116, %117 : vector<8x64xf32>
    %119 = vector.extract_strided_slice %106 {offsets = [0, 128], sizes = [8, 64], strides = [1, 1]} : vector<8x256xf32> to vector<8x64xf32>
    %120 = math.tanh %119 : vector<8x64xf32>
    %121 = vector.extract_strided_slice %106 {offsets = [0, 192], sizes = [8, 64], strides = [1, 1]} : vector<8x256xf32> to vector<8x64xf32>
    %122 = arith.negf %121 : vector<8x64xf32>
    %123 = math.exp %122 : vector<8x64xf32>
    %cst_45 = arith.constant 1.000000e+00 : f32
    %124 = vector.broadcast %cst_45 : f32 to vector<8x64xf32>
    %125 = arith.addf %124, %123 : vector<8x64xf32>
    %126 = arith.divf %124, %125 : vector<8x64xf32>
    %127 = arith.mulf %118, %100 : vector<8x64xf32>
    %128 = arith.mulf %112, %120 : vector<8x64xf32>
    %129 = arith.addf %127, %128 : vector<8x64xf32>
    %130 = math.tanh %129 : vector<8x64xf32>
    %131 = arith.mulf %126, %130 : vector<8x64xf32>
    %c24_46 = arith.constant 24 : index
    %c0_47 = arith.constant 0 : index
    %132 = vector.load %arg14[%c24_46, %c0_47] : memref<64x64xf32, #tpu.memory_space<vmem>>, vector<8x64xf32>
    tpu.vector_store %arg14[%c24_46, %c0_47], %131 {strides = array<i32>} : memref<64x64xf32, #tpu.memory_space<vmem>>, vector<8x64xf32>,
    %c32 = arith.constant 32 : index
    %c0_48 = arith.constant 0 : index
    %133 = vector.load %arg13[%c32, %c0_48] : memref<64x256xf32, #tpu.memory_space<vmem>>, vector<8x256xf32>
    %cst_49 = arith.constant dense<0.000000e+00> : vector<8x256xf32>
    %134 = tpu.matmul %131, %14, %cst_49 {dimension_numbers = #tpu.dot_dimension_numbers<[1], [0], [0], [1], [0, 0, 1, 1], [], []>} : vector<8x64xf32>, vector<64x256xf32>, vector<8x256xf32> -> vector<8x256xf32>
    %135 = arith.addf %133, %134 : vector<8x256xf32>
    %136 = vector.extract_strided_slice %135 {offsets = [0, 0], sizes = [8, 64], strides = [1, 1]} : vector<8x256xf32> to vector<8x64xf32>
    %137 = arith.negf %136 : vector<8x64xf32>
    %138 = math.exp %137 : vector<8x64xf32>
    %cst_50 = arith.constant 1.000000e+00 : f32
    %139 = vector.broadcast %cst_50 : f32 to vector<8x64xf32>
    %140 = arith.addf %139, %138 : vector<8x64xf32>
    %141 = arith.divf %139, %140 : vector<8x64xf32>
    %142 = vector.extract_strided_slice %135 {offsets = [0, 64], sizes = [8, 64], strides = [1, 1]} : vector<8x256xf32> to vector<8x64xf32>
    %143 = arith.negf %142 : vector<8x64xf32>
    %144 = math.exp %143 : vector<8x64xf32>
    %cst_51 = arith.constant 1.000000e+00 : f32
    %145 = vector.broadcast %cst_51 : f32 to vector<8x64xf32>
    %146 = arith.addf %145, %144 : vector<8x64xf32>
    %147 = arith.divf %145, %146 : vector<8x64xf32>
    %148 = vector.extract_strided_slice %135 {offsets = [0, 128], sizes = [8, 64], strides = [1, 1]} : vector<8x256xf32> to vector<8x64xf32>
    %149 = math.tanh %148 : vector<8x64xf32>
    %150 = vector.extract_strided_slice %135 {offsets = [0, 192], sizes = [8, 64], strides = [1, 1]} : vector<8x256xf32> to vector<8x64xf32>
    %151 = arith.negf %150 : vector<8x64xf32>
    %152 = math.exp %151 : vector<8x64xf32>
    %cst_52 = arith.constant 1.000000e+00 : f32
    %153 = vector.broadcast %cst_52 : f32 to vector<8x64xf32>
    %154 = arith.addf %153, %152 : vector<8x64xf32>
    %155 = arith.divf %153, %154 : vector<8x64xf32>
    %156 = arith.mulf %147, %129 : vector<8x64xf32>
    %157 = arith.mulf %141, %149 : vector<8x64xf32>
    %158 = arith.addf %156, %157 : vector<8x64xf32>
    %159 = math.tanh %158 : vector<8x64xf32>
    %160 = arith.mulf %155, %159 : vector<8x64xf32>
    %c32_53 = arith.constant 32 : index
    %c0_54 = arith.constant 0 : index
    %161 = vector.load %arg14[%c32_53, %c0_54] : memref<64x64xf32, #tpu.memory_space<vmem>>, vector<8x64xf32>
    tpu.vector_store %arg14[%c32_53, %c0_54], %160 {strides = array<i32>} : memref<64x64xf32, #tpu.memory_space<vmem>>, vector<8x64xf32>,
    %c40 = arith.constant 40 : index
    %c0_55 = arith.constant 0 : index
    %162 = vector.load %arg13[%c40, %c0_55] : memref<64x256xf32, #tpu.memory_space<vmem>>, vector<8x256xf32>
    %cst_56 = arith.constant dense<0.000000e+00> : vector<8x256xf32>
    %163 = tpu.matmul %160, %14, %cst_56 {dimension_numbers = #tpu.dot_dimension_numbers<[1], [0], [0], [1], [0, 0, 1, 1], [], []>} : vector<8x64xf32>, vector<64x256xf32>, vector<8x256xf32> -> vector<8x256xf32>
    %164 = arith.addf %162, %163 : vector<8x256xf32>
    %165 = vector.extract_strided_slice %164 {offsets = [0, 0], sizes = [8, 64], strides = [1, 1]} : vector<8x256xf32> to vector<8x64xf32>
    %166 = arith.negf %165 : vector<8x64xf32>
    %167 = math.exp %166 : vector<8x64xf32>
    %cst_57 = arith.constant 1.000000e+00 : f32
    %168 = vector.broadcast %cst_57 : f32 to vector<8x64xf32>
    %169 = arith.addf %168, %167 : vector<8x64xf32>
    %170 = arith.divf %168, %169 : vector<8x64xf32>
    %171 = vector.extract_strided_slice %164 {offsets = [0, 64], sizes = [8, 64], strides = [1, 1]} : vector<8x256xf32> to vector<8x64xf32>
    %172 = arith.negf %171 : vector<8x64xf32>
    %173 = math.exp %172 : vector<8x64xf32>
    %cst_58 = arith.constant 1.000000e+00 : f32
    %174 = vector.broadcast %cst_58 : f32 to vector<8x64xf32>
    %175 = arith.addf %174, %173 : vector<8x64xf32>
    %176 = arith.divf %174, %175 : vector<8x64xf32>
    %177 = vector.extract_strided_slice %164 {offsets = [0, 128], sizes = [8, 64], strides = [1, 1]} : vector<8x256xf32> to vector<8x64xf32>
    %178 = math.tanh %177 : vector<8x64xf32>
    %179 = vector.extract_strided_slice %164 {offsets = [0, 192], sizes = [8, 64], strides = [1, 1]} : vector<8x256xf32> to vector<8x64xf32>
    %180 = arith.negf %179 : vector<8x64xf32>
    %181 = math.exp %180 : vector<8x64xf32>
    %cst_59 = arith.constant 1.000000e+00 : f32
    %182 = vector.broadcast %cst_59 : f32 to vector<8x64xf32>
    %183 = arith.addf %182, %181 : vector<8x64xf32>
    %184 = arith.divf %182, %183 : vector<8x64xf32>
    %185 = arith.mulf %176, %158 : vector<8x64xf32>
    %186 = arith.mulf %170, %178 : vector<8x64xf32>
    %187 = arith.addf %185, %186 : vector<8x64xf32>
    %188 = math.tanh %187 : vector<8x64xf32>
    %189 = arith.mulf %184, %188 : vector<8x64xf32>
    %c40_60 = arith.constant 40 : index
    %c0_61 = arith.constant 0 : index
    %190 = vector.load %arg14[%c40_60, %c0_61] : memref<64x64xf32, #tpu.memory_space<vmem>>, vector<8x64xf32>
    tpu.vector_store %arg14[%c40_60, %c0_61], %189 {strides = array<i32>} : memref<64x64xf32, #tpu.memory_space<vmem>>, vector<8x64xf32>,
    %c48 = arith.constant 48 : index
    %c0_62 = arith.constant 0 : index
    %191 = vector.load %arg13[%c48, %c0_62] : memref<64x256xf32, #tpu.memory_space<vmem>>, vector<8x256xf32>
    %cst_63 = arith.constant dense<0.000000e+00> : vector<8x256xf32>
    %192 = tpu.matmul %189, %14, %cst_63 {dimension_numbers = #tpu.dot_dimension_numbers<[1], [0], [0], [1], [0, 0, 1, 1], [], []>} : vector<8x64xf32>, vector<64x256xf32>, vector<8x256xf32> -> vector<8x256xf32>
    %193 = arith.addf %191, %192 : vector<8x256xf32>
    %194 = vector.extract_strided_slice %193 {offsets = [0, 0], sizes = [8, 64], strides = [1, 1]} : vector<8x256xf32> to vector<8x64xf32>
    %195 = arith.negf %194 : vector<8x64xf32>
    %196 = math.exp %195 : vector<8x64xf32>
    %cst_64 = arith.constant 1.000000e+00 : f32
    %197 = vector.broadcast %cst_64 : f32 to vector<8x64xf32>
    %198 = arith.addf %197, %196 : vector<8x64xf32>
    %199 = arith.divf %197, %198 : vector<8x64xf32>
    %200 = vector.extract_strided_slice %193 {offsets = [0, 64], sizes = [8, 64], strides = [1, 1]} : vector<8x256xf32> to vector<8x64xf32>
    %201 = arith.negf %200 : vector<8x64xf32>
    %202 = math.exp %201 : vector<8x64xf32>
    %cst_65 = arith.constant 1.000000e+00 : f32
    %203 = vector.broadcast %cst_65 : f32 to vector<8x64xf32>
    %204 = arith.addf %203, %202 : vector<8x64xf32>
    %205 = arith.divf %203, %204 : vector<8x64xf32>
    %206 = vector.extract_strided_slice %193 {offsets = [0, 128], sizes = [8, 64], strides = [1, 1]} : vector<8x256xf32> to vector<8x64xf32>
    %207 = math.tanh %206 : vector<8x64xf32>
    %208 = vector.extract_strided_slice %193 {offsets = [0, 192], sizes = [8, 64], strides = [1, 1]} : vector<8x256xf32> to vector<8x64xf32>
    %209 = arith.negf %208 : vector<8x64xf32>
    %210 = math.exp %209 : vector<8x64xf32>
    %cst_66 = arith.constant 1.000000e+00 : f32
    %211 = vector.broadcast %cst_66 : f32 to vector<8x64xf32>
    %212 = arith.addf %211, %210 : vector<8x64xf32>
    %213 = arith.divf %211, %212 : vector<8x64xf32>
    %214 = arith.mulf %205, %187 : vector<8x64xf32>
    %215 = arith.mulf %199, %207 : vector<8x64xf32>
    %216 = arith.addf %214, %215 : vector<8x64xf32>
    %217 = math.tanh %216 : vector<8x64xf32>
    %218 = arith.mulf %213, %217 : vector<8x64xf32>
    %c48_67 = arith.constant 48 : index
    %c0_68 = arith.constant 0 : index
    %219 = vector.load %arg14[%c48_67, %c0_68] : memref<64x64xf32, #tpu.memory_space<vmem>>, vector<8x64xf32>
    tpu.vector_store %arg14[%c48_67, %c0_68], %218 {strides = array<i32>} : memref<64x64xf32, #tpu.memory_space<vmem>>, vector<8x64xf32>,
    %c56 = arith.constant 56 : index
    %c0_69 = arith.constant 0 : index
    %220 = vector.load %arg13[%c56, %c0_69] : memref<64x256xf32, #tpu.memory_space<vmem>>, vector<8x256xf32>
    %cst_70 = arith.constant dense<0.000000e+00> : vector<8x256xf32>
    %221 = tpu.matmul %218, %14, %cst_70 {dimension_numbers = #tpu.dot_dimension_numbers<[1], [0], [0], [1], [0, 0, 1, 1], [], []>} : vector<8x64xf32>, vector<64x256xf32>, vector<8x256xf32> -> vector<8x256xf32>
    %222 = arith.addf %220, %221 : vector<8x256xf32>
    %223 = vector.extract_strided_slice %222 {offsets = [0, 0], sizes = [8, 64], strides = [1, 1]} : vector<8x256xf32> to vector<8x64xf32>
    %224 = arith.negf %223 : vector<8x64xf32>
    %225 = math.exp %224 : vector<8x64xf32>
    %cst_71 = arith.constant 1.000000e+00 : f32
    %226 = vector.broadcast %cst_71 : f32 to vector<8x64xf32>
    %227 = arith.addf %226, %225 : vector<8x64xf32>
    %228 = arith.divf %226, %227 : vector<8x64xf32>
    %229 = vector.extract_strided_slice %222 {offsets = [0, 64], sizes = [8, 64], strides = [1, 1]} : vector<8x256xf32> to vector<8x64xf32>
    %230 = arith.negf %229 : vector<8x64xf32>
    %231 = math.exp %230 : vector<8x64xf32>
    %cst_72 = arith.constant 1.000000e+00 : f32
    %232 = vector.broadcast %cst_72 : f32 to vector<8x64xf32>
    %233 = arith.addf %232, %231 : vector<8x64xf32>
    %234 = arith.divf %232, %233 : vector<8x64xf32>
    %235 = vector.extract_strided_slice %222 {offsets = [0, 128], sizes = [8, 64], strides = [1, 1]} : vector<8x256xf32> to vector<8x64xf32>
    %236 = math.tanh %235 : vector<8x64xf32>
    %237 = vector.extract_strided_slice %222 {offsets = [0, 192], sizes = [8, 64], strides = [1, 1]} : vector<8x256xf32> to vector<8x64xf32>
    %238 = arith.negf %237 : vector<8x64xf32>
    %239 = math.exp %238 : vector<8x64xf32>
    %cst_73 = arith.constant 1.000000e+00 : f32
    %240 = vector.broadcast %cst_73 : f32 to vector<8x64xf32>
    %241 = arith.addf %240, %239 : vector<8x64xf32>
    %242 = arith.divf %240, %241 : vector<8x64xf32>
    %243 = arith.mulf %234, %216 : vector<8x64xf32>
    %244 = arith.mulf %228, %236 : vector<8x64xf32>
    %245 = arith.addf %243, %244 : vector<8x64xf32>
    %246 = math.tanh %245 : vector<8x64xf32>
    %247 = arith.mulf %242, %246 : vector<8x64xf32>
    %c56_74 = arith.constant 56 : index
    %c0_75 = arith.constant 0 : index
    %248 = vector.load %arg14[%c56_74, %c0_75] : memref<64x64xf32, #tpu.memory_space<vmem>>, vector<8x64xf32>
    tpu.vector_store %arg14[%c56_74, %c0_75], %247 {strides = array<i32>} : memref<64x64xf32, #tpu.memory_space<vmem>>, vector<8x64xf32>,
    %c0_76 = arith.constant 0 : index
    %c0_77 = arith.constant 0 : index
    %249 = vector.load %arg14[%c0_76, %c0_77] : memref<64x64xf32, #tpu.memory_space<vmem>>, vector<64x64xf32>
    %c0_78 = arith.constant 0 : index
    %c0_79 = arith.constant 0 : index
    %250 = vector.load %arg6[%c0_78, %c0_79] : memref<64x128xf32, #tpu.memory_space<vmem>>, vector<64x128xf32>
    %cst_80 = arith.constant dense<0.000000e+00> : vector<64x128xf32>
    %251 = tpu.matmul %249, %250, %cst_80 {dimension_numbers = #tpu.dot_dimension_numbers<[1], [0], [0], [1], [0, 0, 1, 1], [], []>} : vector<64x64xf32>, vector<64x128xf32>, vector<64x128xf32> -> vector<64x128xf32>
    %c0_81 = arith.constant 0 : index
    %c0_82 = arith.constant 0 : index
    %252 = vector.load %arg7[%c0_81, %c0_82] : memref<1x128xf32, #tpu.memory_space<vmem>>, vector<1x128xf32>
    %253 = vector.broadcast %252 : vector<1x128xf32> to vector<64x128xf32>
    %254 = arith.addf %251, %253 : vector<64x128xf32>
    %c0_83 = arith.constant 0 : index
    %c0_84 = arith.constant 0 : index
    %255 = vector.load %arg10[%c0_83, %c0_84] : memref<64x128xf32, #tpu.memory_space<vmem>>, vector<64x128xf32>
    tpu.vector_store %arg10[%c0_83, %c0_84], %254 {strides = array<i32>} : memref<64x128xf32, #tpu.memory_space<vmem>>, vector<64x128xf32>,
    %c0_85 = arith.constant 0 : index
    %c0_86 = arith.constant 0 : index
    %256 = vector.load %arg11[%c0_85, %c0_86] : memref<8x64xf32, #tpu.memory_space<vmem>>, vector<8x64xf32>
    tpu.vector_store %arg11[%c0_85, %c0_86], %247 {strides = array<i32>} : memref<8x64xf32, #tpu.memory_space<vmem>>, vector<8x64xf32>,
    %c0_87 = arith.constant 0 : index
    %c0_88 = arith.constant 0 : index
    %257 = vector.load %arg12[%c0_87, %c0_88] : memref<8x64xf32, #tpu.memory_space<vmem>>, vector<8x64xf32>
    tpu.vector_store %arg12[%c0_87, %c0_88], %245 {strides = array<i32>} : memref<8x64xf32, #tpu.memory_space<vmem>>, vector<8x64xf32>,
    return
  }
}

</mosaic_0001>

<llo_original>
// kernel: qnet_forward.1
$region0: #{qnet_forward.1}
  #allocation0 [shape = 'u32[]', space=smem, size = 0x4, offset = 0x4, fixed_abs, tag = 'smem constant byte address 0x4 - core index']
  #allocation1 [shape = 'u32[144,128]{1,0:T(1,128)}', space=vmem, size = 0x12000, scoped, tag = 'internal scratch']
  #allocation2 [shape = 'f32[64,256]{1,0:T(8,128)}', space=vmem, size = 0x10000, scoped, tag = 'scratch operand']
  #allocation3 [shape = 'f32[64,64]{1,0:T(8,128)}', space=vmem, size = 0x8000, scoped, tag = 'scratch operand']
  %s0 = inlined_call_operand.vmem [shape: f32[64,6], index: 0, kind: input, shape index: {}]
  %s1 = inlined_call_operand.vmem [shape: f32[6,64], index: 1, kind: input, shape index: {}]
  %s2 = inlined_call_operand.vmem [shape: f32[1,64], index: 2, kind: input, shape index: {}]
  %s3 = inlined_call_operand.vmem [shape: f32[64,256], index: 3, kind: input, shape index: {}]
  %s4 = inlined_call_operand.vmem [shape: f32[64,256], index: 4, kind: input, shape index: {}]
  %s5 = inlined_call_operand.vmem [shape: f32[1,256], index: 5, kind: input, shape index: {}]
  %s6 = inlined_call_operand.vmem [shape: f32[64,128], index: 6, kind: input, shape index: {}]
  %s7 = inlined_call_operand.vmem [shape: f32[1,128], index: 7, kind: input, shape index: {}]
  %s8 = inlined_call_operand.vmem [shape: f32[8,64], index: 8, kind: input, shape index: {}]
  %s9 = inlined_call_operand.vmem [shape: f32[8,64], index: 9, kind: input, shape index: {}]
  %s10 = inlined_call_operand.vmem [shape: f32[64,128], index: 10, kind: output, shape index: {0}]
  %s11 = inlined_call_operand.vmem [shape: f32[8,64], index: 11, kind: output, shape index: {1}]
  %s12 = inlined_call_operand.vmem [shape: f32[8,64], index: 12, kind: output, shape index: {2}]
  %13 = xla_tuple %s10, %s11, %s12
  %s14 = sld [smem:[#allocation0]]
  $region66: #{qnet_forward.1} parent=0
    _
  %s16 = ssub.s32 1, %s14
  %s17 = scalar_select 0, %s16, %s14
  // Predicated region
  $region2: #{qnet_forward.1} parent=0 // pred_check
    _
  $region3: #{qnet_forward.1} parent=0 // pred_check_branch
    %19 = sbr.rel (0) target = $region5
  $region4: #{qnet_forward.1} parent=0 // pred_region
    _
  $region5: #{qnet_forward.1} parent=0 // pred_fallthru
    _
  // Predicated region
  $region6: #{qnet_forward.1} parent=0 // pred_check
    _
  $region7: #{qnet_forward.1} parent=0 // pred_check_branch
    %21 = sbr.rel (0) target = $region9
  $region8: #{qnet_forward.1} parent=0 // pred_region
    _
  $region9: #{qnet_forward.1} parent=0 // pred_fallthru
    _
  // Predicated region
  $region10: #{qnet_forward.1} parent=0 // pred_check
    _
  $region11: #{qnet_forward.1} parent=0 // pred_check_branch
    %23 = sbr.rel (0) target = $region13
  $region12: #{qnet_forward.1} parent=0 // pred_region
    _
  $region13: #{qnet_forward.1} parent=0 // pred_fallthru
    _
  // Predicated region
  $region14: #{qnet_forward.1} parent=0 // pred_check
    _
  $region15: #{qnet_forward.1} parent=0 // pred_check_branch
    %25 = sbr.rel (0) target = $region17
  $region16: #{qnet_forward.1} parent=0 // pred_region
    _
  $region17: #{qnet_forward.1} parent=0 // pred_fallthru
    _
  // Predicated region
  $region18: #{qnet_forward.1} parent=0 // pred_check
    _
  $region19: #{qnet_forward.1} parent=0 // pred_check_branch
    %27 = sbr.rel (0) target = $region21
  $region20: #{qnet_forward.1} parent=0 // pred_region
    _
  $region21: #{qnet_forward.1} parent=0 // pred_fallthru
    _
  // Predicated region
  $region22: #{qnet_forward.1} parent=0 // pred_check
    _
  $region23: #{qnet_forward.1} parent=0 // pred_check_branch
    %29 = sbr.rel (0) target = $region25
  $region24: #{qnet_forward.1} parent=0 // pred_region
    _
  $region25: #{qnet_forward.1} parent=0 // pred_fallthru
    _
  // Predicated region
  $region26: #{qnet_forward.1} parent=0 // pred_check
    _
  $region27: #{qnet_forward.1} parent=0 // pred_check_branch
    %31 = sbr.rel (0) target = $region29
  $region28: #{qnet_forward.1} parent=0 // pred_region
    _
  $region29: #{qnet_forward.1} parent=0 // pred_fallthru
    _
  // Predicated region
  $region30: #{qnet_forward.1} parent=0 // pred_check
    _
  $region31: #{qnet_forward.1} parent=0 // pred_check_branch
    %33 = sbr.rel (0) target = $region33
  $region32: #{qnet_forward.1} parent=0 // pred_region
    _
  $region33: #{qnet_forward.1} parent=0 // pred_fallthru
    _
  // Predicated region
  $region34: #{qnet_forward.1} parent=0 // pred_check
    _
  $region35: #{qnet_forward.1} parent=0 // pred_check_branch
    %35 = sbr.rel (0) target = $region37
  $region36: #{qnet_forward.1} parent=0 // pred_region
    _
  $region37: #{qnet_forward.1} parent=0 // pred_fallthru
    _
  // Predicated region
  $region38: #{qnet_forward.1} parent=0 // pred_check
    _
  $region39: #{qnet_forward.1} parent=0 // pred_check_branch
    %37 = sbr.rel (0) target = $region41
  $region40: #{qnet_forward.1} parent=0 // pred_region
    _
  $region41: #{qnet_forward.1} parent=0 // pred_fallthru
    _
  %v38 = vld [vmem:[%s0] sm:$0xff]
  %v39 = vld [vmem:[%s0 + $0x8] sm:$0xff]
  %v40 = vld [vmem:[%s0 + $0x10] sm:$0xff]
  %v41 = vld [vmem:[%s0 + $0x18] sm:$0xff]
  %v42 = vld [vmem:[%s0 + $0x20] sm:$0xff]
  %v43 = vld [vmem:[%s0 + $0x28] sm:$0xff]
  %v44 = vld [vmem:[%s0 + $0x30] sm:$0xff]
  %v45 = vld [vmem:[%s0 + $0x38] sm:$0xff]
  %v46 = vld [vmem:[%s1] sm:$0x3f]
  %v47 = vld [vmem:[%s2] sm:$0x1]
  %v49 = vlaneseq
  %v50 = vshrl.u32 %v49, 7
  %v51 = vsub.s32 0, %v50
  %v52 = vrot.slane %v47, %v51
  %vm54 = vcmask 48128
  %v56 = vsel %vm54, %v38, 0
  %v59 = vsel %vm54, %v39, 0
  %v62 = vsel %vm54, %v40, 0
  %v65 = vsel %vm54, %v41, 0
  %v68 = vsel %vm54, %v42, 0
  %v71 = vsel %vm54, %v43, 0
  %v74 = vsel %vm54, %v44, 0
  %v77 = vsel %vm54, %v45, 0
  %vm79 = vcmask 1045504
  %v81 = vsel %vm79, %v46, 0
  %83 = vmatprep.subr.mxu0 0.0
  %84 = vmatpush1.msra.mxu0 %v81
  %85 = vmatprep.subr.mxu0 0.0
  %86 = vmatpush1.msra.mxu0 0.0
  %87 = vmatprep.subr.mxu0 0.0
  %88 = vmatpush1.msra.mxu0 0.0
  %89 = vmatprep.subr.mxu0 0.0
  %90 = vmatpush1.msra.mxu0 0.0
  %91 = vmatprep.subr.mxu0 0.0
  %92 = vmatpush1.msra.mxu0 0.0
  %93 = vmatprep.subr.mxu0 0.0
  %94 = vmatpush1.msra.mxu0 0.0
  %95 = vmatprep.subr.mxu0 0.0
  %96 = vmatpush1.msra.mxu0 0.0
  %97 = vmatprep.subr.mxu0 0.0
  %98 = vmatpush1.msra.mxu0 0.0
  %99 = vmatprep.subr.mxu0 0.0
  %100 = vmatpush1.msra.mxu0 0.0
  %101 = vmatprep.subr.mxu0 0.0
  %102 = vmatpush1.msra.mxu0 0.0
  %103 = vmatprep.subr.mxu0 0.0
  %104 = vmatpush1.msra.mxu0 0.0
  %105 = vmatprep.subr.mxu0 0.0
  %106 = vmatpush1.msra.mxu0 0.0
  %107 = vmatprep.subr.mxu0 0.0
  %108 = vmatpush1.msra.mxu0 0.0
  %109 = vmatprep.subr.mxu0 0.0
  %110 = vmatpush1.msra.mxu0 0.0
  %111 = vmatprep.subr.mxu0 0.0
  %112 = vmatpush1.msra.mxu0 0.0
  %113 = vmatprep.subr.mxu0 0.0
  %114 = vmatpush1.msra.mxu0 0.0
  %115 = vmatprep.subr.mxu0 0.0
  %116 = vmatpush1.msra.mxu0 0.0
  %117 = vmatprep.subr.mxu0 0.0
  %118 = vmatpush1.msra.mxu0 0.0
  %119 = vmatprep.subr.mxu0 0.0
  %120 = vmatpush1.msra.mxu0 0.0
  %121 = vmatprep.subr.mxu0 0.0
  %122 = vmatpush1.msra.mxu0 0.0
  %123 = vmatprep.subr.mxu0 0.0
  %124 = vmatpush1.msra.mxu0 0.0
  %125 = vmatprep.subr.mxu0 0.0
  %126 = vmatpush1.msra.mxu0 0.0
  %127 = vmatprep.subr.mxu0 0.0
  %128 = vmatpush1.msra.mxu0 0.0
  %129 = vmatprep.subr.mxu0 0.0
  %130 = vmatpush1.msra.mxu0 0.0
  %131 = vmatprep.subr.mxu0 0.0
  %132 = vmatpush1.msra.mxu0 0.0
  %133 = vmatprep.subr.mxu0 0.0
  %134 = vmatpush1.msra.mxu0 0.0
  %135 = vmatprep.subr.mxu0 0.0
  %136 = vmatpush1.msra.mxu0 0.0
  %137 = vmatprep.subr.mxu0 0.0
  %138 = vmatpush1.msra.mxu0 0.0
  %139 = vmatprep.subr.mxu0 0.0
  %140 = vmatpush1.msra.mxu0 0.0
  %141 = vmatprep.subr.mxu0 0.0
  %142 = vmatpush1.msra.mxu0 0.0
  %143 = vmatprep.subr.mxu0 0.0
  %144 = vmatpush1.msra.mxu0 0.0
  %145 = vmatprep.subr.mxu0 0.0
  %146 = vmatpush1.msra.mxu0 0.0
  %147 = vmatprep.mubr.f32.mxu0 0.0
  %148 = vmatmul.mubr.f32.gmra.mrb[0].mxu0 %v56
  %v149 = vpop.f32.mrb[0].mxu0
  %v150 = vadd.f32 %v52, %v149
  %v151 = vpop.f32.mrb[0].mxu0
  %152 = vmatprep.mubr.f32.mxu0 0.0
  %153 = vmatmul.mubr.f32.gmra.mrb[0].mxu0 %v59
  %v154 = vpop.f32.mrb[0].mxu0
  %v155 = vadd.f32 %v52, %v154
  %v156 = vpop.f32.mrb[0].mxu0
  %157 = vmatprep.mubr.f32.mxu0 0.0
  %158 = vmatmul.mubr.f32.gmra.mrb[0].mxu0 %v62
  %v159 = vpop.f32.mrb[0].mxu0
  %v160 = vadd.f32 %v52, %v159
  %v161 = vpop.f32.mrb[0].mxu0
  %162 = vmatprep.mubr.f32.mxu0 0.0
  %163 = vmatmul.mubr.f32.gmra.mrb[0].mxu0 %v65
  %v164 = vpop.f32.mrb[0].mxu0
  %v165 = vadd.f32 %v52, %v164
  %v166 = vpop.f32.mrb[0].mxu0
  %167 = vmatprep.mubr.f32.mxu0 0.0
  %168 = vmatmul.mubr.f32.gmra.mrb[0].mxu0 %v68
  %v169 = vpop.f32.mrb[0].mxu0
  %v170 = vadd.f32 %v52, %v169
  %v171 = vpop.f32.mrb[0].mxu0
  %172 = vmatprep.mubr.f32.mxu0 0.0
  %173 = vmatmul.mubr.f32.gmra.mrb[0].mxu0 %v71
  %v174 = vpop.f32.mrb[0].mxu0
  %v175 = vadd.f32 %v52, %v174
  %v176 = vpop.f32.mrb[0].mxu0
  %177 = vmatprep.mubr.f32.mxu0 0.0
  %178 = vmatmul.mubr.f32.gmra.mrb[0].mxu0 %v74
  %v179 = vpop.f32.mrb[0].mxu0
  %v180 = vadd.f32 %v52, %v179
  %v181 = vpop.f32.mrb[0].mxu0
  %182 = vmatprep.mubr.f32.mxu0 0.0
  %183 = vmatmul.mubr.f32.gmra.mrb[0].mxu0 %v77
  %v184 = vpop.f32.mrb[0].mxu0
  %v185 = vadd.f32 %v52, %v184
  %v186 = vpop.f32.mrb[0].mxu0
  %187 = vdwg.mxu0
  %v188 = vmax.f32 %v150, 0.0
  %v189 = vmax.f32 %v155, 0.0
  %v190 = vmax.f32 %v160, 0.0
  %v191 = vmax.f32 %v165, 0.0
  %v192 = vmax.f32 %v170, 0.0
  %v193 = vmax.f32 %v175, 0.0
  %v194 = vmax.f32 %v180, 0.0
  %v195 = vmax.f32 %v185, 0.0
  %v196 = vld [vmem:[%s3] sm:$0xff]
  %v197 = vld [vmem:[%s3 + $0x8] sm:$0xff]
  %v198 = vld [vmem:[%s3 + $0x10] sm:$0xff]
  %v199 = vld [vmem:[%s3 + $0x18] sm:$0xff]
  %v200 = vld [vmem:[%s3 + $0x20] sm:$0xff]
  %v201 = vld [vmem:[%s3 + $0x28] sm:$0xff]
  %v202 = vld [vmem:[%s3 + $0x30] sm:$0xff]
  %v203 = vld [vmem:[%s3 + $0x38] sm:$0xff]
  %v204 = vld [vmem:[%s3 + $0x40] sm:$0xff]
  %v205 = vld [vmem:[%s3 + $0x48] sm:$0xff]
  %v206 = vld [vmem:[%s3 + $0x50] sm:$0xff]
  %v207 = vld [vmem:[%s3 + $0x58] sm:$0xff]
  %v208 = vld [vmem:[%s3 + $0x60] sm:$0xff]
  %v209 = vld [vmem:[%s3 + $0x68] sm:$0xff]
  %v210 = vld [vmem:[%s3 + $0x70] sm:$0xff]
  %v211 = vld [vmem:[%s3 + $0x78] sm:$0xff]
  %v212 = vld [vmem:[%s5] sm:$0x3]
  %v214 = vlaneseq
  %v215 = vshrl.u32 %v214, 7
  %v216 = vsub.s32 0, %v215
  %v217 = vrot.slane %v212, %v216
  %v218 = vlaneseq
  %v219 = vshrl.u32 %v218, 7
  %v220 = vsub.s32 1, %v219
  %v221 = vrot.slane %v212, %v220
  %vm224 = vcmask 523264
  %v226 = vsel %vm224, %v188, 0
  %v229 = vsel %vm224, %v189, 0
  %v232 = vsel %vm224, %v190, 0
  %v235 = vsel %vm224, %v191, 0
  %v238 = vsel %vm224, %v192, 0
  %v241 = vsel %vm224, %v193, 0
  %v244 = vsel %vm224, %v194, 0
  %v247 = vsel %vm224, %v195, 0
  %249 = vmatprep.subr.mxu0 %v197
  %250 = vmatpush1.msra.mxu0 %v196
  %251 = vmatprep.subr.mxu0 %v199
  %252 = vmatpush1.msra.mxu0 %v198
  %253 = vmatprep.subr.mxu0 %v201
  %254 = vmatpush1.msra.mxu0 %v200
  %255 = vmatprep.subr.mxu0 %v203
  %256 = vmatpush1.msra.mxu0 %v202
  %257 = vmatprep.subr.mxu0 %v205
  %258 = vmatpush1.msra.mxu0 %v204
  %259 = vmatprep.subr.mxu0 %v207
  %260 = vmatpush1.msra.mxu0 %v206
  %261 = vmatprep.subr.mxu0 %v209
  %262 = vmatpush1.msra.mxu0 %v208
  %263 = vmatprep.subr.mxu0 %v211
  %264 = vmatpush1.msra.mxu0 %v210
  %265 = vmatprep.subr.mxu0 0.0
  %266 = vmatpush1.msra.mxu0 0.0
  %267 = vmatprep.subr.mxu0 0.0
  %268 = vmatpush1.msra.mxu0 0.0
  %269 = vmatprep.subr.mxu0 0.0
  %270 = vmatpush1.msra.mxu0 0.0
  %271 = vmatprep.subr.mxu0 0.0
  %272 = vmatpush1.msra.mxu0 0.0
  %273 = vmatprep.subr.mxu0 0.0
  %274 = vmatpush1.msra.mxu0 0.0
  %275 = vmatprep.subr.mxu0 0.0
  %276 = vmatpush1.msra.mxu0 0.0
  %277 = vmatprep.subr.mxu0 0.0
  %278 = vmatpush1.msra.mxu0 0.0
  %279 = vmatprep.subr.mxu0 0.0
  %280 = vmatpush1.msra.mxu0 0.0
  %281 = vmatprep.subr.mxu0 0.0
  %282 = vmatpush1.msra.mxu0 0.0
  %283 = vmatprep.subr.mxu0 0.0
  %284 = vmatpush1.msra.mxu0 0.0
  %285 = vmatprep.subr.mxu0 0.0
  %286 = vmatpush1.msra.mxu0 0.0
  %287 = vmatprep.subr.mxu0 0.0
  %288 = vmatpush1.msra.mxu0 0.0
  %289 = vmatprep.subr.mxu0 0.0
  %290 = vmatpush1.msra.mxu0 0.0
  %291 = vmatprep.subr.mxu0 0.0
  %292 = vmatpush1.msra.mxu0 0.0
  %293 = vmatprep.subr.mxu0 0.0
  %294 = vmatpush1.msra.mxu0 0.0
  %295 = vmatprep.subr.mxu0 0.0
  %296 = vmatpush1.msra.mxu0 0.0
  %297 = vmatprep.subr.mxu0 0.0
  %298 = vmatpush1.msra.mxu0 0.0
  %299 = vmatprep.subr.mxu0 0.0
  %300 = vmatpush1.msra.mxu0 0.0
  %301 = vmatprep.subr.mxu0 0.0
  %302 = vmatpush1.msra.mxu0 0.0
  %303 = vmatprep.subr.mxu0 0.0
  %304 = vmatpush1.msra.mxu0 0.0
  %305 = vmatprep.subr.mxu0 0.0
  %306 = vmatpush1.msra.mxu0 0.0
  %307 = vmatprep.subr.mxu0 0.0
  %308 = vmatpush1.msra.mxu0 0.0
  %309 = vmatprep.subr.mxu0 0.0
  %310 = vmatpush1.msra.mxu0 0.0
  %311 = vmatprep.subr.mxu0 0.0
  %312 = vmatpush1.msra.mxu0 0.0
  %313 = vmatprep.mubr.f32.mxu0 0.0
  %314 = vmatmul.mubr.f32.gmra.mrb[0].mxu0 %v226
  %v315 = vpop.f32.mrb[0].mxu0
  %v316 = vadd.f32 %v217, %v315
  %v317 = vpop.f32.mrb[0].mxu0
  %v318 = vadd.f32 %v221, %v317
  %319 = vmatprep.mubr.f32.mxu0 0.0
  %320 = vmatmul.mubr.f32.gmra.mrb[0].mxu0 %v229
  %v321 = vpop.f32.mrb[0].mxu0
  %v322 = vadd.f32 %v217, %v321
  %v323 = vpop.f32.mrb[0].mxu0
  %v324 = vadd.f32 %v221, %v323
  %325 = vmatprep.mubr.f32.mxu0 0.0
  %326 = vmatmul.mubr.f32.gmra.mrb[0].mxu0 %v232
  %v327 = vpop.f32.mrb[0].mxu0
  %v328 = vadd.f32 %v217, %v327
  %v329 = vpop.f32.mrb[0].mxu0
  %v330 = vadd.f32 %v221, %v329
  %331 = vmatprep.mubr.f32.mxu0 0.0
  %332 = vmatmul.mubr.f32.gmra.mrb[0].mxu0 %v235
  %v333 = vpop.f32.mrb[0].mxu0
  %v334 = vadd.f32 %v217, %v333
  %v335 = vpop.f32.mrb[0].mxu0
  %v336 = vadd.f32 %v221, %v335
  %337 = vmatprep.mubr.f32.mxu0 0.0
  %338 = vmatmul.mubr.f32.gmra.mrb[0].mxu0 %v238
  %v339 = vpop.f32.mrb[0].mxu0
  %v340 = vadd.f32 %v217, %v339
  %v341 = vpop.f32.mrb[0].mxu0
  %v342 = vadd.f32 %v221, %v341
  %343 = vmatprep.mubr.f32.mxu0 0.0
  %344 = vmatmul.mubr.f32.gmra.mrb[0].mxu0 %v241
  %v345 = vpop.f32.mrb[0].mxu0
  %v346 = vadd.f32 %v217, %v345
  %v347 = vpop.f32.mrb[0].mxu0
  %v348 = vadd.f32 %v221, %v347
  %349 = vmatprep.mubr.f32.mxu0 0.0
  %350 = vmatmul.mubr.f32.gmra.mrb[0].mxu0 %v244
  %v351 = vpop.f32.mrb[0].mxu0
  %v352 = vadd.f32 %v217, %v351
  %v353 = vpop.f32.mrb[0].mxu0
  %v354 = vadd.f32 %v221, %v353
  %355 = vmatprep.mubr.f32.mxu0 0.0
  %356 = vmatmul.mubr.f32.gmra.mrb[0].mxu0 %v247
  %v357 = vpop.f32.mrb[0].mxu0
  %v358 = vadd.f32 %v217, %v357
  %v359 = vpop.f32.mrb[0].mxu0
  %v360 = vadd.f32 %v221, %v359
  %361 = vdwg.mxu0
  %362 = vst [vmem:[#allocation2] sm:$0xff] %v316
  %363 = vst [vmem:[#allocation2 + $0x8] sm:$0xff] %v318
  %364 = vst [vmem:[#allocation2 + $0x10] sm:$0xff] %v322
  %365 = vst [vmem:[#allocation2 + $0x18] sm:$0xff] %v324
  %366 = vst [vmem:[#allocation2 + $0x20] sm:$0xff] %v328
  %367 = vst [vmem:[#allocation2 + $0x28] sm:$0xff] %v330
  %368 = vst [vmem:[#allocation2 + $0x30] sm:$0xff] %v334
  %369 = vst [vmem:[#allocation2 + $0x38] sm:$0xff] %v336
  %370 = vst [vmem:[#allocation2 + $0x40] sm:$0xff] %v340
  %371 = vst [vmem:[#allocation2 + $0x48] sm:$0xff] %v342
  %372 = vst [vmem:[#allocation2 + $0x50] sm:$0xff] %v346
  %373 = vst [vmem:[#allocation2 + $0x58] sm:$0xff] %v348
  %374 = vst [vmem:[#allocation2 + $0x60] sm:$0xff] %v352
  %375 = vst [vmem:[#allocation2 + $0x68] sm:$0xff] %v354
  %376 = vst [vmem:[#allocation2 + $0x70] sm:$0xff] %v358
  %377 = vst [vmem:[#allocation2 + $0x78] sm:$0xff] %v360
  %v378 = vld [vmem:[%s4] sm:$0xff]
  %v379 = vld [vmem:[%s4 + $0x8] sm:$0xff]
  %v380 = vld [vmem:[%s4 + $0x10] sm:$0xff]
  %v381 = vld [vmem:[%s4 + $0x18] sm:$0xff]
  %v382 = vld [vmem:[%s4 + $0x20] sm:$0xff]
  %v383 = vld [vmem:[%s4 + $0x28] sm:$0xff]
  %v384 = vld [vmem:[%s4 + $0x30] sm:$0xff]
  %v385 = vld [vmem:[%s4 + $0x38] sm:$0xff]
  %v386 = vld [vmem:[%s4 + $0x40] sm:$0xff]
  %v387 = vld [vmem:[%s4 + $0x48] sm:$0xff]
  %v388 = vld [vmem:[%s4 + $0x50] sm:$0xff]
  %v389 = vld [vmem:[%s4 + $0x58] sm:$0xff]
  %v390 = vld [vmem:[%s4 + $0x60] sm:$0xff]
  %v391 = vld [vmem:[%s4 + $0x68] sm:$0xff]
  %v392 = vld [vmem:[%s4 + $0x70] sm:$0xff]
  %v393 = vld [vmem:[%s4 + $0x78] sm:$0xff]
  %v394 = vld [vmem:[%s8] sm:$0xff]
  %v395 = vld [vmem:[%s9] sm:$0xff]
  %v396 = vld [vmem:[#allocation2] sm:$0xff]
  %v397 = vld [vmem:[#allocation2 + $0x8] sm:$0xff]
  %v399 = vsel %vm224, %v394, 0
  %401 = vmatprep.subr.mxu0 %v379
  %402 = vmatpush1.msra.mxu0 %v378
  %403 = vmatprep.subr.mxu0 %v381
  %404 = vmatpush1.msra.mxu0 %v380
  %405 = vmatprep.subr.mxu0 %v383
  %406 = vmatpush1.msra.mxu0 %v382
  %407 = vmatprep.subr.mxu0 %v385
  %408 = vmatpush1.msra.mxu0 %v384
  %409 = vmatprep.subr.mxu0 %v387
  %410 = vmatpush1.msra.mxu0 %v386
  %411 = vmatprep.subr.mxu0 %v389
  %412 = vmatpush1.msra.mxu0 %v388
  %413 = vmatprep.subr.mxu0 %v391
  %414 = vmatpush1.msra.mxu0 %v390
  %415 = vmatprep.subr.mxu0 %v393
  %416 = vmatpush1.msra.mxu0 %v392
  %417 = vmatprep.subr.mxu0 0.0
  %418 = vmatpush1.msra.mxu0 0.0
  %419 = vmatprep.subr.mxu0 0.0
  %420 = vmatpush1.msra.mxu0 0.0
  %421 = vmatprep.subr.mxu0 0.0
  %422 = vmatpush1.msra.mxu0 0.0
  %423 = vmatprep.subr.mxu0 0.0
  %424 = vmatpush1.msra.mxu0 0.0
  %425 = vmatprep.subr.mxu0 0.0
  %426 = vmatpush1.msra.mxu0 0.0
  %427 = vmatprep.subr.mxu0 0.0
  %428 = vmatpush1.msra.mxu0 0.0
  %429 = vmatprep.subr.mxu0 0.0
  %430 = vmatpush1.msra.mxu0 0.0
  %431 = vmatprep.subr.mxu0 0.0
  %432 = vmatpush1.msra.mxu0 0.0
  %433 = vmatprep.subr.mxu0 0.0
  %434 = vmatpush1.msra.mxu0 0.0
  %435 = vmatprep.subr.mxu0 0.0
  %436 = vmatpush1.msra.mxu0 0.0
  %437 = vmatprep.subr.mxu0 0.0
  %438 = vmatpush1.msra.mxu0 0.0
  %439 = vmatprep.subr.mxu0 0.0
  %440 = vmatpush1.msra.mxu0 0.0
  %441 = vmatprep.subr.mxu0 0.0
  %442 = vmatpush1.msra.mxu0 0.0
  %443 = vmatprep.subr.mxu0 0.0
  %444 = vmatpush1.msra.mxu0 0.0
  %445 = vmatprep.subr.mxu0 0.0
  %446 = vmatpush1.msra.mxu0 0.0
  %447 = vmatprep.subr.mxu0 0.0
  %448 = vmatpush1.msra.mxu0 0.0
  %449 = vmatprep.subr.mxu0 0.0
  %450 = vmatpush1.msra.mxu0 0.0
  %451 = vmatprep.subr.mxu0 0.0
  %452 = vmatpush1.msra.mxu0 0.0
  %453 = vmatprep.subr.mxu0 0.0
  %454 = vmatpush1.msra.mxu0 0.0
  %455 = vmatprep.subr.mxu0 0.0
  %456 = vmatpush1.msra.mxu0 0.0
  %457 = vmatprep.subr.mxu0 0.0
  %458 = vmatpush1.msra.mxu0 0.0
  %459 = vmatprep.subr.mxu0 0.0
  %460 = vmatpush1.msra.mxu0 0.0
  %461 = vmatprep.subr.mxu0 0.0
  %462 = vmatpush1.msra.mxu0 0.0
  %463 = vmatprep.subr.mxu0 0.0
  %464 = vmatpush1.msra.mxu0 0.0
  %465 = vmatprep.mubr.f32.mxu0 0.0
  %466 = vmatmul.mubr.f32.gmra.mrb[0].mxu0 %v399
  %v467 = vpop.f32.mrb[0].mxu0
  %v468 = vadd.f32 0.0, %v467
  %v469 = vpop.f32.mrb[0].mxu0
  %v470 = vadd.f32 0.0, %v469
  %471 = vdwg.mxu0
  %v472 = vadd.f32 %v396, %v468
  %v473 = vadd.f32 %v397, %v470
  %v474 = vxor.u32 %v472, 2147483648
  %v475 = vmul.f32 %v474, 1.442695
  %v476 = vpow.pop %v475
  %v477 = vadd.f32 %v476, 1.0
  %v478 = vrcp.pop %v477
  %v479 = vmul.f32 1.0, %v478
  %v480 = vtanh.pop %v473
  %v481 = vxor.u32 %v473, 2147483648
  %v482 = vmul.f32 %v481, 1.442695
  %v483 = vpow.pop %v482
  %v484 = vadd.f32 %v483, 1.0
  %v485 = vrcp.pop %v484
  %v486 = vmul.f32 1.0, %v485
  %488 = vrot.lane.b32.xlu0 %v395, 64
  %v489 = vpop.permute.xlu0 %488
  %v491 = vmul.f32 %v479, %v489
  %v492 = vmul.f32 %v479, %v480
  %494 = vrot.lane.b32.xlu0 %v492, 64
  %v495 = vpop.permute.xlu0 %494
  %v497 = vadd.f32 %v491, %v495
  %v498 = vtanh.pop %v497
  %v499 = vmul.f32 %v486, %v498
  %501 = vrot.lane.b32.xlu0 %v499, 64
  %v502 = vpop.permute.xlu0 %501
  %504 = vst.msk [vmem:[#allocation3] sm:$0xff] %vm224, %v502
  %v505 = vld [vmem:[#allocation2 + $0x10] sm:$0xff]
  %v506 = vld [vmem:[#allocation2 + $0x18] sm:$0xff]
  %v507 = vsel %vm224, %v502, 0
  %509 = vmatprep.subr.mxu0 %v379
  %510 = vmatpush1.msra.mxu0 %v378
  %511 = vmatprep.subr.mxu0 %v381
  %512 = vmatpush1.msra.mxu0 %v380
  %513 = vmatprep.subr.mxu0 %v383
  %514 = vmatpush1.msra.mxu0 %v382
  %515 = vmatprep.subr.mxu0 %v385
  %516 = vmatpush1.msra.mxu0 %v384
  %517 = vmatprep.subr.mxu0 %v387
  %518 = vmatpush1.msra.mxu0 %v386
  %519 = vmatprep.subr.mxu0 %v389
  %520 = vmatpush1.msra.mxu0 %v388
  %521 = vmatprep.subr.mxu0 %v391
  %522 = vmatpush1.msra.mxu0 %v390
  %523 = vmatprep.subr.mxu0 %v393
  %524 = vmatpush1.msra.mxu0 %v392
  %525 = vmatprep.subr.mxu0 0.0
  %526 = vmatpush1.msra.mxu0 0.0
  %527 = vmatprep.subr.mxu0 0.0
  %528 = vmatpush1.msra.mxu0 0.0
  %529 = vmatprep.subr.mxu0 0.0
  %530 = vmatpush1.msra.mxu0 0.0
  %531 = vmatprep.subr.mxu0 0.0
  %532 = vmatpush1.msra.mxu0 0.0
  %533 = vmatprep.subr.mxu0 0.0
  %534 = vmatpush1.msra.mxu0 0.0
  %535 = vmatprep.subr.mxu0 0.0
  %536 = vmatpush1.msra.mxu0 0.0
  %537 = vmatprep.subr.mxu0 0.0
  %538 = vmatpush1.msra.mxu0 0.0
  %539 = vmatprep.subr.mxu0 0.0
  %540 = vmatpush1.msra.mxu0 0.0
  %541 = vmatprep.subr.mxu0 0.0
  %542 = vmatpush1.msra.mxu0 0.0
  %543 = vmatprep.subr.mxu0 0.0
  %544 = vmatpush1.msra.mxu0 0.0
  %545 = vmatprep.subr.mxu0 0.0
  %546 = vmatpush1.msra.mxu0 0.0
  %547 = vmatprep.subr.mxu0 0.0
  %548 = vmatpush1.msra.mxu0 0.0
  %549 = vmatprep.subr.mxu0 0.0
  %550 = vmatpush1.msra.mxu0 0.0
  %551 = vmatprep.subr.mxu0 0.0
  %552 = vmatpush1.msra.mxu0 0.0
  %553 = vmatprep.subr.mxu0 0.0
  %554 = vmatpush1.msra.mxu0 0.0
  %555 = vmatprep.subr.mxu0 0.0
  %556 = vmatpush1.msra.mxu0 0.0
  %557 = vmatprep.subr.mxu0 0.0
  %558 = vmatpush1.msra.mxu0 0.0
  %559 = vmatprep.subr.mxu0 0.0
  %560 = vmatpush1.msra.mxu0 0.0
  %561 = vmatprep.subr.mxu0 0.0
  %562 = vmatpush1.msra.mxu0 0.0
  %563 = vmatprep.subr.mxu0 0.0
  %564 = vmatpush1.msra.mxu0 0.0
  %565 = vmatprep.subr.mxu0 0.0
  %566 = vmatpush1.msra.mxu0 0.0
  %567 = vmatprep.subr.mxu0 0.0
  %568 = vmatpush1.msra.mxu0 0.0
  %569 = vmatprep.subr.mxu0 0.0
  %570 = vmatpush1.msra.mxu0 0.0
  %571 = vmatprep.subr.mxu0 0.0
  %572 = vmatpush1.msra.mxu0 0.0
  %573 = vmatprep.mubr.f32.mxu0 0.0
  %574 = vmatmul.mubr.f32.gmra.mrb[0].mxu0 %v507
  %v575 = vpop.f32.mrb[0].mxu0
  %v576 = vadd.f32 0.0, %v575
  %v577 = vpop.f32.mrb[0].mxu0
  %v578 = vadd.f32 0.0, %v577
  %579 = vdwg.mxu0
  %v580 = vadd.f32 %v505, %v576
  %v581 = vadd.f32 %v506, %v578
  %v582 = vxor.u32 %v580, 2147483648
  %v583 = vmul.f32 %v582, 1.442695
  %v584 = vpow.pop %v583
  %v585 = vadd.f32 %v584, 1.0
  %v586 = vrcp.pop %v585
  %v587 = vmul.f32 1.0, %v586
  %v588 = vtanh.pop %v581
  %v589 = vxor.u32 %v581, 2147483648
  %v590 = vmul.f32 %v589, 1.442695
  %v591 = vpow.pop %v590
  %v592 = vadd.f32 %v591, 1.0
  %v593 = vrcp.pop %v592
  %v594 = vmul.f32 1.0, %v593
  %v595 = vmul.f32 %v587, %v497
  %v596 = vmul.f32 %v587, %v588
  %598 = vrot.lane.b32.xlu0 %v596, 64
  %v599 = vpop.permute.xlu0 %598
  %v601 = vadd.f32 %v595, %v599
  %v602 = vtanh.pop %v601
  %v603 = vmul.f32 %v594, %v602
  %605 = vrot.lane.b32.xlu0 %v603, 64
  %v606 = vpop.permute.xlu0 %605
  %608 = vst.msk [vmem:[#allocation3 + $0x8] sm:$0xff] %vm224, %v606
  %v609 = vld [vmem:[#allocation2 + $0x20] sm:$0xff]
  %v610 = vld [vmem:[#allocation2 + $0x28] sm:$0xff]
  %v611 = vsel %vm224, %v606, 0
  %613 = vmatprep.subr.mxu0 %v379
  %614 = vmatpush1.msra.mxu0 %v378
  %615 = vmatprep.subr.mxu0 %v381
  %616 = vmatpush1.msra.mxu0 %v380
  %617 = vmatprep.subr.mxu0 %v383
  %618 = vmatpush1.msra.mxu0 %v382
  %619 = vmatprep.subr.mxu0 %v385
  %620 = vmatpush1.msra.mxu0 %v384
  %621 = vmatprep.subr.mxu0 %v387
  %622 = vmatpush1.msra.mxu0 %v386
  %623 = vmatprep.subr.mxu0 %v389
  %624 = vmatpush1.msra.mxu0 %v388
  %625 = vmatprep.subr.mxu0 %v391
  %626 = vmatpush1.msra.mxu0 %v390
  %627 = vmatprep.subr.mxu0 %v393
  %628 = vmatpush1.msra.mxu0 %v392
  %629 = vmatprep.subr.mxu0 0.0
  %630 = vmatpush1.msra.mxu0 0.0
  %631 = vmatprep.subr.mxu0 0.0
  %632 = vmatpush1.msra.mxu0 0.0
  %633 = vmatprep.subr.mxu0 0.0
  %634 = vmatpush1.msra.mxu0 0.0
  %635 = vmatprep.subr.mxu0 0.0
  %636 = vmatpush1.msra.mxu0 0.0
  %637 = vmatprep.subr.mxu0 0.0
  %638 = vmatpush1.msra.mxu0 0.0
  %639 = vmatprep.subr.mxu0 0.0
  %640 = vmatpush1.msra.mxu0 0.0
  %641 = vmatprep.subr.mxu0 0.0
  %642 = vmatpush1.msra.mxu0 0.0
  %643 = vmatprep.subr.mxu0 0.0
  %644 = vmatpush1.msra.mxu0 0.0
  %645 = vmatprep.subr.mxu0 0.0
  %646 = vmatpush1.msra.mxu0 0.0
  %647 = vmatprep.subr.mxu0 0.0
  %648 = vmatpush1.msra.mxu0 0.0
  %649 = vmatprep.subr.mxu0 0.0
  %650 = vmatpush1.msra.mxu0 0.0
  %651 = vmatprep.subr.mxu0 0.0
  %652 = vmatpush1.msra.mxu0 0.0
  %653 = vmatprep.subr.mxu0 0.0
  %654 = vmatpush1.msra.mxu0 0.0
  %655 = vmatprep.subr.mxu0 0.0
  %656 = vmatpush1.msra.mxu0 0.0
  %657 = vmatprep.subr.mxu0 0.0
  %658 = vmatpush1.msra.mxu0 0.0
  %659 = vmatprep.subr.mxu0 0.0
  %660 = vmatpush1.msra.mxu0 0.0
  %661 = vmatprep.subr.mxu0 0.0
  %662 = vmatpush1.msra.mxu0 0.0
  %663 = vmatprep.subr.mxu0 0.0
  %664 = vmatpush1.msra.mxu0 0.0
  %665 = vmatprep.subr.mxu0 0.0
  %666 = vmatpush1.msra.mxu0 0.0
  %667 = vmatprep.subr.mxu0 0.0
  %668 = vmatpush1.msra.mxu0 0.0
  %669 = vmatprep.subr.mxu0 0.0
  %670 = vmatpush1.msra.mxu0 0.0
  %671 = vmatprep.subr.mxu0 0.0
  %672 = vmatpush1.msra.mxu0 0.0
  %673 = vmatprep.subr.mxu0 0.0
  %674 = vmatpush1.msra.mxu0 0.0
  %675 = vmatprep.subr.mxu0 0.0
  %676 = vmatpush1.msra.mxu0 0.0
  %677 = vmatprep.mubr.f32.mxu0 0.0
  %678 = vmatmul.mubr.f32.gmra.mrb[0].mxu0 %v611
  %v679 = vpop.f32.mrb[0].mxu0
  %v680 = vadd.f32 0.0, %v679
  %v681 = vpop.f32.mrb[0].mxu0
  %v682 = vadd.f32 0.0, %v681
  %683 = vdwg.mxu0
  %v684 = vadd.f32 %v609, %v680
  %v685 = vadd.f32 %v610, %v682
  %v686 = vxor.u32 %v684, 2147483648
  %v687 = vmul.f32 %v686, 1.442695
  %v688 = vpow.pop %v687
  %v689 = vadd.f32 %v688, 1.0
  %v690 = vrcp.pop %v689
  %v691 = vmul.f32 1.0, %v690
  %v692 = vtanh.pop %v685
  %v693 = vxor.u32 %v685, 2147483648
  %v694 = vmul.f32 %v693, 1.442695
  %v695 = vpow.pop %v694
  %v696 = vadd.f32 %v695, 1.0
  %v697 = vrcp.pop %v696
  %v698 = vmul.f32 1.0, %v697
  %v699 = vmul.f32 %v691, %v601
  %v700 = vmul.f32 %v691, %v692
  %702 = vrot.lane.b32.xlu0 %v700, 64
  %v703 = vpop.permute.xlu0 %702
  %v705 = vadd.f32 %v699, %v703
  %v706 = vtanh.pop %v705
  %v707 = vmul.f32 %v698, %v706
  %709 = vrot.lane.b32.xlu0 %v707, 64
  %v710 = vpop.permute.xlu0 %709
  %712 = vst.msk [vmem:[#allocation3 + $0x10] sm:$0xff] %vm224, %v710
  %v713 = vld [vmem:[#allocation2 + $0x30] sm:$0xff]
  %v714 = vld [vmem:[#allocation2 + $0x38] sm:$0xff]
  %v715 = vsel %vm224, %v710, 0
  %717 = vmatprep.subr.mxu0 %v379
  %718 = vmatpush1.msra.mxu0 %v378
  %719 = vmatprep.subr.mxu0 %v381
  %720 = vmatpush1.msra.mxu0 %v380
  %721 = vmatprep.subr.mxu0 %v383
  %722 = vmatpush1.msra.mxu0 %v382
  %723 = vmatprep.subr.mxu0 %v385
  %724 = vmatpush1.msra.mxu0 %v384
  %725 = vmatprep.subr.mxu0 %v387
  %726 = vmatpush1.msra.mxu0 %v386
  %727 = vmatprep.subr.mxu0 %v389
  %728 = vmatpush1.msra.mxu0 %v388
  %729 = vmatprep.subr.mxu0 %v391
  %730 = vmatpush1.msra.mxu0 %v390
  %731 = vmatprep.subr.mxu0 %v393
  %732 = vmatpush1.msra.mxu0 %v392
  %733 = vmatprep.subr.mxu0 0.0
  %734 = vmatpush1.msra.mxu0 0.0
  %735 = vmatprep.subr.mxu0 0.0
  %736 = vmatpush1.msra.mxu0 0.0
  %737 = vmatprep.subr.mxu0 0.0
  %738 = vmatpush1.msra.mxu0 0.0
  %739 = vmatprep.subr.mxu0 0.0
  %740 = vmatpush1.msra.mxu0 0.0
  %741 = vmatprep.subr.mxu0 0.0
  %742 = vmatpush1.msra.mxu0 0.0
  %743 = vmatprep.subr.mxu0 0.0
  %744 = vmatpush1.msra.mxu0 0.0
  %745 = vmatprep.subr.mxu0 0.0
  %746 = vmatpush1.msra.mxu0 0.0
  %747 = vmatprep.subr.mxu0 0.0
  %748 = vmatpush1.msra.mxu0 0.0
  %749 = vmatprep.subr.mxu0 0.0
  %750 = vmatpush1.msra.mxu0 0.0
  %751 = vmatprep.subr.mxu0 0.0
  %752 = vmatpush1.msra.mxu0 0.0
  %753 = vmatprep.subr.mxu0 0.0
  %754 = vmatpush1.msra.mxu0 0.0
  %755 = vmatprep.subr.mxu0 0.0
  %756 = vmatpush1.msra.mxu0 0.0
  %757 = vmatprep.subr.mxu0 0.0
  %758 = vmatpush1.msra.mxu0 0.0
  %759 = vmatprep.subr.mxu0 0.0
  %760 = vmatpush1.msra.mxu0 0.0
  %761 = vmatprep.subr.mxu0 0.0
  %762 = vmatpush1.msra.mxu0 0.0
  %763 = vmatprep.subr.mxu0 0.0
  %764 = vmatpush1.msra.mxu0 0.0
  %765 = vmatprep.subr.mxu0 0.0
  %766 = vmatpush1.msra.mxu0 0.0
  %767 = vmatprep.subr.mxu0 0.0
  %768 = vmatpush1.msra.mxu0 0.0
  %769 = vmatprep.subr.mxu0 0.0
  %770 = vmatpush1.msra.mxu0 0.0
  %771 = vmatprep.subr.mxu0 0.0
  %772 = vmatpush1.msra.mxu0 0.0
  %773 = vmatprep.subr.mxu0 0.0
  %774 = vmatpush1.msra.mxu0 0.0
  %775 = vmatprep.subr.mxu0 0.0
  %776 = vmatpush1.msra.mxu0 0.0
  %777 = vmatprep.subr.mxu0 0.0
  %778 = vmatpush1.msra.mxu0 0.0
  %779 = vmatprep.subr.mxu0 0.0
  %780 = vmatpush1.msra.mxu0 0.0
  %781 = vmatprep.mubr.f32.mxu0 0.0
  %782 = vmatmul.mubr.f32.gmra.mrb[0].mxu0 %v715
  %v783 = vpop.f32.mrb[0].mxu0
  %v784 = vadd.f32 0.0, %v783
  %v785 = vpop.f32.mrb[0].mxu0
  %v786 = vadd.f32 0.0, %v785
  %787 = vdwg.mxu0
  %v788 = vadd.f32 %v713, %v784
  %v789 = vadd.f32 %v714, %v786
  %v790 = vxor.u32 %v788, 2147483648
  %v791 = vmul.f32 %v790, 1.442695
  %v792 = vpow.pop %v791
  %v793 = vadd.f32 %v792, 1.0
  %v794 = vrcp.pop %v793
  %v795 = vmul.f32 1.0, %v794
  %v796 = vtanh.pop %v789
  %v797 = vxor.u32 %v789, 2147483648
  %v798 = vmul.f32 %v797, 1.442695
  %v799 = vpow.pop %v798
  %v800 = vadd.f32 %v799, 1.0
  %v801 = vrcp.pop %v800
  %v802 = vmul.f32 1.0, %v801
  %v803 = vmul.f32 %v795, %v705
  %v804 = vmul.f32 %v795, %v796
  %806 = vrot.lane.b32.xlu0 %v804, 64
  %v807 = vpop.permute.xlu0 %806
  %v809 = vadd.f32 %v803, %v807
  %v810 = vtanh.pop %v809
  %v811 = vmul.f32 %v802, %v810
  %813 = vrot.lane.b32.xlu0 %v811, 64
  %v814 = vpop.permute.xlu0 %813
  %816 = vst.msk [vmem:[#allocation3 + $0x18] sm:$0xff] %vm224, %v814
  %v817 = vld [vmem:[#allocation2 + $0x40] sm:$0xff]
  %v818 = vld [vmem:[#allocation2 + $0x48] sm:$0xff]
  %v819 = vsel %vm224, %v814, 0
  %821 = vmatprep.subr.mxu0 %v379
  %822 = vmatpush1.msra.mxu0 %v378
  %823 = vmatprep.subr.mxu0 %v381
  %824 = vmatpush1.msra.mxu0 %v380
  %825 = vmatprep.subr.mxu0 %v383
  %826 = vmatpush1.msra.mxu0 %v382
  %827 = vmatprep.subr.mxu0 %v385
  %828 = vmatpush1.msra.mxu0 %v384
  %829 = vmatprep.subr.mxu0 %v387
  %830 = vmatpush1.msra.mxu0 %v386
  %831 = vmatprep.subr.mxu0 %v389
  %832 = vmatpush1.msra.mxu0 %v388
  %833 = vmatprep.subr.mxu0 %v391
  %834 = vmatpush1.msra.mxu0 %v390
  %835 = vmatprep.subr.mxu0 %v393
  %836 = vmatpush1.msra.mxu0 %v392
  %837 = vmatprep.subr.mxu0 0.0
  %838 = vmatpush1.msra.mxu0 0.0
  %839 = vmatprep.subr.mxu0 0.0
  %840 = vmatpush1.msra.mxu0 0.0
  %841 = vmatprep.subr.mxu0 0.0
  %842 = vmatpush1.msra.mxu0 0.0
  %843 = vmatprep.subr.mxu0 0.0
  %844 = vmatpush1.msra.mxu0 0.0
  %845 = vmatprep.subr.mxu0 0.0
  %846 = vmatpush1.msra.mxu0 0.0
  %847 = vmatprep.subr.mxu0 0.0
  %848 = vmatpush1.msra.mxu0 0.0
  %849 = vmatprep.subr.mxu0 0.0
  %850 = vmatpush1.msra.mxu0 0.0
  %851 = vmatprep.subr.mxu0 0.0
  %852 = vmatpush1.msra.mxu0 0.0
  %853 = vmatprep.subr.mxu0 0.0
  %854 = vmatpush1.msra.mxu0 0.0
  %855 = vmatprep.subr.mxu0 0.0
  %856 = vmatpush1.msra.mxu0 0.0
  %857 = vmatprep.subr.mxu0 0.0
  %858 = vmatpush1.msra.mxu0 0.0
  %859 = vmatprep.subr.mxu0 0.0
  %860 = vmatpush1.msra.mxu0 0.0
  %861 = vmatprep.subr.mxu0 0.0
  %862 = vmatpush1.msra.mxu0 0.0
  %863 = vmatprep.subr.mxu0 0.0
  %864 = vmatpush1.msra.mxu0 0.0
  %865 = vmatprep.subr.mxu0 0.0
  %866 = vmatpush1.msra.mxu0 0.0
  %867 = vmatprep.subr.mxu0 0.0
  %868 = vmatpush1.msra.mxu0 0.0
  %869 = vmatprep.subr.mxu0 0.0
  %870 = vmatpush1.msra.mxu0 0.0
  %871 = vmatprep.subr.mxu0 0.0
  %872 = vmatpush1.msra.mxu0 0.0
  %873 = vmatprep.subr.mxu0 0.0
  %874 = vmatpush1.msra.mxu0 0.0
  %875 = vmatprep.subr.mxu0 0.0
  %876 = vmatpush1.msra.mxu0 0.0
  %877 = vmatprep.subr.mxu0 0.0
  %878 = vmatpush1.msra.mxu0 0.0
  %879 = vmatprep.subr.mxu0 0.0
  %880 = vmatpush1.msra.mxu0 0.0
  %881 = vmatprep.subr.mxu0 0.0
  %882 = vmatpush1.msra.mxu0 0.0
  %883 = vmatprep.subr.mxu0 0.0
  %884 = vmatpush1.msra.mxu0 0.0
  %885 = vmatprep.mubr.f32.mxu0 0.0
  %886 = vmatmul.mubr.f32.gmra.mrb[0].mxu0 %v819
  %v887 = vpop.f32.mrb[0].mxu0
  %v888 = vadd.f32 0.0, %v887
  %v889 = vpop.f32.mrb[0].mxu0
  %v890 = vadd.f32 0.0, %v889
  %891 = vdwg.mxu0
  %v892 = vadd.f32 %v817, %v888
  %v893 = vadd.f32 %v818, %v890
  %v894 = vxor.u32 %v892, 2147483648
  %v895 = vmul.f32 %v894, 1.442695
  %v896 = vpow.pop %v895
  %v897 = vadd.f32 %v896, 1.0
  %v898 = vrcp.pop %v897
  %v899 = vmul.f32 1.0, %v898
  %v900 = vtanh.pop %v893
  %v901 = vxor.u32 %v893, 2147483648
  %v902 = vmul.f32 %v901, 1.442695
  %v903 = vpow.pop %v902
  %v904 = vadd.f32 %v903, 1.0
  %v905 = vrcp.pop %v904
  %v906 = vmul.f32 1.0, %v905
  %v907 = vmul.f32 %v899, %v809
  %v908 = vmul.f32 %v899, %v900
  %910 = vrot.lane.b32.xlu0 %v908, 64
  %v911 = vpop.permute.xlu0 %910
  %v913 = vadd.f32 %v907, %v911
  %v914 = vtanh.pop %v913
  %v915 = vmul.f32 %v906, %v914
  %917 = vrot.lane.b32.xlu0 %v915, 64
  %v918 = vpop.permute.xlu0 %917
  %920 = vst.msk [vmem:[#allocation3 + $0x20] sm:$0xff] %vm224, %v918
  %v921 = vld [vmem:[#allocation2 + $0x50] sm:$0xff]
  %v922 = vld [vmem:[#allocation2 + $0x58] sm:$0xff]
  %v923 = vsel %vm224, %v918, 0
  %925 = vmatprep.subr.mxu0 %v379
  %926 = vmatpush1.msra.mxu0 %v378
  %927 = vmatprep.subr.mxu0 %v381
  %928 = vmatpush1.msra.mxu0 %v380
  %929 = vmatprep.subr.mxu0 %v383
  %930 = vmatpush1.msra.mxu0 %v382
  %931 = vmatprep.subr.mxu0 %v385
  %932 = vmatpush1.msra.mxu0 %v384
  %933 = vmatprep.subr.mxu0 %v387
  %934 = vmatpush1.msra.mxu0 %v386
  %935 = vmatprep.subr.mxu0 %v389
  %936 = vmatpush1.msra.mxu0 %v388
  %937 = vmatprep.subr.mxu0 %v391
  %938 = vmatpush1.msra.mxu0 %v390
  %939 = vmatprep.subr.mxu0 %v393
  %940 = vmatpush1.msra.mxu0 %v392
  %941 = vmatprep.subr.mxu0 0.0
  %942 = vmatpush1.msra.mxu0 0.0
  %943 = vmatprep.subr.mxu0 0.0
  %944 = vmatpush1.msra.mxu0 0.0
  %945 = vmatprep.subr.mxu0 0.0
  %946 = vmatpush1.msra.mxu0 0.0
  %947 = vmatprep.subr.mxu0 0.0
  %948 = vmatpush1.msra.mxu0 0.0
  %949 = vmatprep.subr.mxu0 0.0
  %950 = vmatpush1.msra.mxu0 0.0
  %951 = vmatprep.subr.mxu0 0.0
  %952 = vmatpush1.msra.mxu0 0.0
  %953 = vmatprep.subr.mxu0 0.0
  %954 = vmatpush1.msra.mxu0 0.0
  %955 = vmatprep.subr.mxu0 0.0
  %956 = vmatpush1.msra.mxu0 0.0
  %957 = vmatprep.subr.mxu0 0.0
  %958 = vmatpush1.msra.mxu0 0.0
  %959 = vmatprep.subr.mxu0 0.0
  %960 = vmatpush1.msra.mxu0 0.0
  %961 = vmatprep.subr.mxu0 0.0
  %962 = vmatpush1.msra.mxu0 0.0
  %963 = vmatprep.subr.mxu0 0.0
  %964 = vmatpush1.msra.mxu0 0.0
  %965 = vmatprep.subr.mxu0 0.0
  %966 = vmatpush1.msra.mxu0 0.0
  %967 = vmatprep.subr.mxu0 0.0
  %968 = vmatpush1.msra.mxu0 0.0
  %969 = vmatprep.subr.mxu0 0.0
  %970 = vmatpush1.msra.mxu0 0.0
  %971 = vmatprep.subr.mxu0 0.0
  %972 = vmatpush1.msra.mxu0 0.0
  %973 = vmatprep.subr.mxu0 0.0
  %974 = vmatpush1.msra.mxu0 0.0
  %975 = vmatprep.subr.mxu0 0.0
  %976 = vmatpush1.msra.mxu0 0.0
  %977 = vmatprep.subr.mxu0 0.0
  %978 = vmatpush1.msra.mxu0 0.0
  %979 = vmatprep.subr.mxu0 0.0
  %980 = vmatpush1.msra.mxu0 0.0
  %981 = vmatprep.subr.mxu0 0.0
  %982 = vmatpush1.msra.mxu0 0.0
  %983 = vmatprep.subr.mxu0 0.0
  %984 = vmatpush1.msra.mxu0 0.0
  %985 = vmatprep.subr.mxu0 0.0
  %986 = vmatpush1.msra.mxu0 0.0
  %987 = vmatprep.subr.mxu0 0.0
  %988 = vmatpush1.msra.mxu0 0.0
  %989 = vmatprep.mubr.f32.mxu0 0.0
  %990 = vmatmul.mubr.f32.gmra.mrb[0].mxu0 %v923
  %v991 = vpop.f32.mrb[0].mxu0
  %v992 = vadd.f32 0.0, %v991
  %v993 = vpop.f32.mrb[0].mxu0
  %v994 = vadd.f32 0.0, %v993
  %995 = vdwg.mxu0
  %v996 = vadd.f32 %v921, %v992
  %v997 = vadd.f32 %v922, %v994
  %v998 = vxor.u32 %v996, 2147483648
  %v999 = vmul.f32 %v998, 1.442695
  %v1000 = vpow.pop %v999
  %v1001 = vadd.f32 %v1000, 1.0
  %v1002 = vrcp.pop %v1001
  %v1003 = vmul.f32 1.0, %v1002
  %v1004 = vtanh.pop %v997
  %v1005 = vxor.u32 %v997, 2147483648
  %v1006 = vmul.f32 %v1005, 1.442695
  %v1007 = vpow.pop %v1006
  %v1008 = vadd.f32 %v1007, 1.0
  %v1009 = vrcp.pop %v1008
  %v1010 = vmul.f32 1.0, %v1009
  %v1011 = vmul.f32 %v1003, %v913
  %v1012 = vmul.f32 %v1003, %v1004
  %1014 = vrot.lane.b32.xlu0 %v1012, 64
  %v1015 = vpop.permute.xlu0 %1014
  %v1017 = vadd.f32 %v1011, %v1015
  %v1018 = vtanh.pop %v1017
  %v1019 = vmul.f32 %v1010, %v1018
  %1021 = vrot.lane.b32.xlu0 %v1019, 64
  %v1022 = vpop.permute.xlu0 %1021
  %1024 = vst.msk [vmem:[#allocation3 + $0x28] sm:$0xff] %vm224, %v1022
  %v1025 = vld [vmem:[#allocation2 + $0x60] sm:$0xff]
  %v1026 = vld [vmem:[#allocation2 + $0x68] sm:$0xff]
  %v1027 = vsel %vm224, %v1022, 0
  %1029 = vmatprep.subr.mxu0 %v379
  %1030 = vmatpush1.msra.mxu0 %v378
  %1031 = vmatprep.subr.mxu0 %v381
  %1032 = vmatpush1.msra.mxu0 %v380
  %1033 = vmatprep.subr.mxu0 %v383
  %1034 = vmatpush1.msra.mxu0 %v382
  %1035 = vmatprep.subr.mxu0 %v385
  %1036 = vmatpush1.msra.mxu0 %v384
  %1037 = vmatprep.subr.mxu0 %v387
  %1038 = vmatpush1.msra.mxu0 %v386
  %1039 = vmatprep.subr.mxu0 %v389
  %1040 = vmatpush1.msra.mxu0 %v388
  %1041 = vmatprep.subr.mxu0 %v391
  %1042 = vmatpush1.msra.mxu0 %v390
  %1043 = vmatprep.subr.mxu0 %v393
  %1044 = vmatpush1.msra.mxu0 %v392
  %1045 = vmatprep.subr.mxu0 0.0
  %1046 = vmatpush1.msra.mxu0 0.0
  %1047 = vmatprep.subr.mxu0 0.0
  %1048 = vmatpush1.msra.mxu0 0.0
  %1049 = vmatprep.subr.mxu0 0.0
  %1050 = vmatpush1.msra.mxu0 0.0
  %1051 = vmatprep.subr.mxu0 0.0
  %1052 = vmatpush1.msra.mxu0 0.0
  %1053 = vmatprep.subr.mxu0 0.0
  %1054 = vmatpush1.msra.mxu0 0.0
  %1055 = vmatprep.subr.mxu0 0.0
  %1056 = vmatpush1.msra.mxu0 0.0
  %1057 = vmatprep.subr.mxu0 0.0
  %1058 = vmatpush1.msra.mxu0 0.0
  %1059 = vmatprep.subr.mxu0 0.0
  %1060 = vmatpush1.msra.mxu0 0.0
  %1061 = vmatprep.subr.mxu0 0.0
  %1062 = vmatpush1.msra.mxu0 0.0
  %1063 = vmatprep.subr.mxu0 0.0
  %1064 = vmatpush1.msra.mxu0 0.0
  %1065 = vmatprep.subr.mxu0 0.0
  %1066 = vmatpush1.msra.mxu0 0.0
  %1067 = vmatprep.subr.mxu0 0.0
  %1068 = vmatpush1.msra.mxu0 0.0
  %1069 = vmatprep.subr.mxu0 0.0
  %1070 = vmatpush1.msra.mxu0 0.0
  %1071 = vmatprep.subr.mxu0 0.0
  %1072 = vmatpush1.msra.mxu0 0.0
  %1073 = vmatprep.subr.mxu0 0.0
  %1074 = vmatpush1.msra.mxu0 0.0
  %1075 = vmatprep.subr.mxu0 0.0
  %1076 = vmatpush1.msra.mxu0 0.0
  %1077 = vmatprep.subr.mxu0 0.0
  %1078 = vmatpush1.msra.mxu0 0.0
  %1079 = vmatprep.subr.mxu0 0.0
  %1080 = vmatpush1.msra.mxu0 0.0
  %1081 = vmatprep.subr.mxu0 0.0
  %1082 = vmatpush1.msra.mxu0 0.0
  %1083 = vmatprep.subr.mxu0 0.0
  %1084 = vmatpush1.msra.mxu0 0.0
  %1085 = vmatprep.subr.mxu0 0.0
  %1086 = vmatpush1.msra.mxu0 0.0
  %1087 = vmatprep.subr.mxu0 0.0
  %1088 = vmatpush1.msra.mxu0 0.0
  %1089 = vmatprep.subr.mxu0 0.0
  %1090 = vmatpush1.msra.mxu0 0.0
  %1091 = vmatprep.subr.mxu0 0.0
  %1092 = vmatpush1.msra.mxu0 0.0
  %1093 = vmatprep.mubr.f32.mxu0 0.0
  %1094 = vmatmul.mubr.f32.gmra.mrb[0].mxu0 %v1027
  %v1095 = vpop.f32.mrb[0].mxu0
  %v1096 = vadd.f32 0.0, %v1095
  %v1097 = vpop.f32.mrb[0].mxu0
  %v1098 = vadd.f32 0.0, %v1097
  %1099 = vdwg.mxu0
  %v1100 = vadd.f32 %v1025, %v1096
  %v1101 = vadd.f32 %v1026, %v1098
  %v1102 = vxor.u32 %v1100, 2147483648
  %v1103 = vmul.f32 %v1102, 1.442695
  %v1104 = vpow.pop %v1103
  %v1105 = vadd.f32 %v1104, 1.0
  %v1106 = vrcp.pop %v1105
  %v1107 = vmul.f32 1.0, %v1106
  %v1108 = vtanh.pop %v1101
  %v1109 = vxor.u32 %v1101, 2147483648
  %v1110 = vmul.f32 %v1109, 1.442695
  %v1111 = vpow.pop %v1110
  %v1112 = vadd.f32 %v1111, 1.0
  %v1113 = vrcp.pop %v1112
  %v1114 = vmul.f32 1.0, %v1113
  %v1115 = vmul.f32 %v1107, %v1017
  %v1116 = vmul.f32 %v1107, %v1108
  %1118 = vrot.lane.b32.xlu0 %v1116, 64
  %v1119 = vpop.permute.xlu0 %1118
  %v1121 = vadd.f32 %v1115, %v1119
  %v1122 = vtanh.pop %v1121
  %v1123 = vmul.f32 %v1114, %v1122
  %1125 = vrot.lane.b32.xlu0 %v1123, 64
  %v1126 = vpop.permute.xlu0 %1125
  %1128 = vst.msk [vmem:[#allocation3 + $0x30] sm:$0xff] %vm224, %v1126
  %v1129 = vld [vmem:[#allocation2 + $0x70] sm:$0xff]
  %v1130 = vld [vmem:[#allocation2 + $0x78] sm:$0xff]
  %v1131 = vsel %vm224, %v1126, 0
  %1133 = vmatprep.subr.mxu0 %v379
  %1134 = vmatpush1.msra.mxu0 %v378
  %1135 = vmatprep.subr.mxu0 %v381
  %1136 = vmatpush1.msra.mxu0 %v380
  %1137 = vmatprep.subr.mxu0 %v383
  %1138 = vmatpush1.msra.mxu0 %v382
  %1139 = vmatprep.subr.mxu0 %v385
  %1140 = vmatpush1.msra.mxu0 %v384
  %1141 = vmatprep.subr.mxu0 %v387
  %1142 = vmatpush1.msra.mxu0 %v386
  %1143 = vmatprep.subr.mxu0 %v389
  %1144 = vmatpush1.msra.mxu0 %v388
  %1145 = vmatprep.subr.mxu0 %v391
  %1146 = vmatpush1.msra.mxu0 %v390
  %1147 = vmatprep.subr.mxu0 %v393
  %1148 = vmatpush1.msra.mxu0 %v392
  %1149 = vmatprep.subr.mxu0 0.0
  %1150 = vmatpush1.msra.mxu0 0.0
  %1151 = vmatprep.subr.mxu0 0.0
  %1152 = vmatpush1.msra.mxu0 0.0
  %1153 = vmatprep.subr.mxu0 0.0
  %1154 = vmatpush1.msra.mxu0 0.0
  %1155 = vmatprep.subr.mxu0 0.0
  %1156 = vmatpush1.msra.mxu0 0.0
  %1157 = vmatprep.subr.mxu0 0.0
  %1158 = vmatpush1.msra.mxu0 0.0
  %1159 = vmatprep.subr.mxu0 0.0
  %1160 = vmatpush1.msra.mxu0 0.0
  %1161 = vmatprep.subr.mxu0 0.0
  %1162 = vmatpush1.msra.mxu0 0.0
  %1163 = vmatprep.subr.mxu0 0.0
  %1164 = vmatpush1.msra.mxu0 0.0
  %1165 = vmatprep.subr.mxu0 0.0
  %1166 = vmatpush1.msra.mxu0 0.0
  %1167 = vmatprep.subr.mxu0 0.0
  %1168 = vmatpush1.msra.mxu0 0.0
  %1169 = vmatprep.subr.mxu0 0.0
  %1170 = vmatpush1.msra.mxu0 0.0
  %1171 = vmatprep.subr.mxu0 0.0
  %1172 = vmatpush1.msra.mxu0 0.0
  %1173 = vmatprep.subr.mxu0 0.0
  %1174 = vmatpush1.msra.mxu0 0.0
  %1175 = vmatprep.subr.mxu0 0.0
  %1176 = vmatpush1.msra.mxu0 0.0
  %1177 = vmatprep.subr.mxu0 0.0
  %1178 = vmatpush1.msra.mxu0 0.0
  %1179 = vmatprep.subr.mxu0 0.0
  %1180 = vmatpush1.msra.mxu0 0.0
  %1181 = vmatprep.subr.mxu0 0.0
  %1182 = vmatpush1.msra.mxu0 0.0
  %1183 = vmatprep.subr.mxu0 0.0
  %1184 = vmatpush1.msra.mxu0 0.0
  %1185 = vmatprep.subr.mxu0 0.0
  %1186 = vmatpush1.msra.mxu0 0.0
  %1187 = vmatprep.subr.mxu0 0.0
  %1188 = vmatpush1.msra.mxu0 0.0
  %1189 = vmatprep.subr.mxu0 0.0
  %1190 = vmatpush1.msra.mxu0 0.0
  %1191 = vmatprep.subr.mxu0 0.0
  %1192 = vmatpush1.msra.mxu0 0.0
  %1193 = vmatprep.subr.mxu0 0.0
  %1194 = vmatpush1.msra.mxu0 0.0
  %1195 = vmatprep.subr.mxu0 0.0
  %1196 = vmatpush1.msra.mxu0 0.0
  %1197 = vmatprep.mubr.f32.mxu0 0.0
  %1198 = vmatmul.mubr.f32.gmra.mrb[0].mxu0 %v1131
  %v1199 = vpop.f32.mrb[0].mxu0
  %v1200 = vadd.f32 0.0, %v1199
  %v1201 = vpop.f32.mrb[0].mxu0
  %v1202 = vadd.f32 0.0, %v1201
  %1203 = vdwg.mxu0
  %v1204 = vadd.f32 %v1129, %v1200
  %v1205 = vadd.f32 %v1130, %v1202
  %v1206 = vxor.u32 %v1204, 2147483648
  %v1207 = vmul.f32 %v1206, 1.442695
  %v1208 = vpow.pop %v1207
  %v1209 = vadd.f32 %v1208, 1.0
  %v1210 = vrcp.pop %v1209
  %v1211 = vmul.f32 1.0, %v1210
  %v1212 = vtanh.pop %v1205
  %v1213 = vxor.u32 %v1205, 2147483648
  %v1214 = vmul.f32 %v1213, 1.442695
  %v1215 = vpow.pop %v1214
  %v1216 = vadd.f32 %v1215, 1.0
  %v1217 = vrcp.pop %v1216
  %v1218 = vmul.f32 1.0, %v1217
  %v1219 = vmul.f32 %v1211, %v1121
  %v1220 = vmul.f32 %v1211, %v1212
  %1222 = vrot.lane.b32.xlu0 %v1220, 64
  %v1223 = vpop.permute.xlu0 %1222
  %v1225 = vadd.f32 %v1219, %v1223
  %v1226 = vtanh.pop %v1225
  %v1227 = vmul.f32 %v1218, %v1226
  %1229 = vrot.lane.b32.xlu0 %v1227, 64
  %v1230 = vpop.permute.xlu0 %1229
  %1232 = vst.msk [vmem:[#allocation3 + $0x38] sm:$0xff] %vm224, %v1230
  %v1233 = vld [vmem:[#allocation3] sm:$0xff]
  %v1234 = vld [vmem:[#allocation3 + $0x8] sm:$0xff]
  %v1235 = vld [vmem:[#allocation3 + $0x10] sm:$0xff]
  %v1236 = vld [vmem:[#allocation3 + $0x18] sm:$0xff]
  %v1237 = vld [vmem:[#allocation3 + $0x20] sm:$0xff]
  %v1238 = vld [vmem:[#allocation3 + $0x28] sm:$0xff]
  %v1239 = vld [vmem:[#allocation3 + $0x30] sm:$0xff]
  %v1240 = vld [vmem:[#allocation3 + $0x38] sm:$0xff]
  %v1241 = vld [vmem:[%s6] sm:$0xff]
  %v1242 = vld [vmem:[%s6 + $0x8] sm:$0xff]
  %v1243 = vld [vmem:[%s6 + $0x10] sm:$0xff]
  %v1244 = vld [vmem:[%s6 + $0x18] sm:$0xff]
  %v1245 = vld [vmem:[%s6 + $0x20] sm:$0xff]
  %v1246 = vld [vmem:[%s6 + $0x28] sm:$0xff]
  %v1247 = vld [vmem:[%s6 + $0x30] sm:$0xff]
  %v1248 = vld [vmem:[%s6 + $0x38] sm:$0xff]
  %v1249 = vld [vmem:[%s7] sm:$0x1]
  %v1251 = vlaneseq
  %v1252 = vshrl.u32 %v1251, 7
  %v1253 = vsub.s32 0, %v1252
  %v1254 = vrot.slane %v1249, %v1253
  %v1257 = vsel %vm224, %v1233, 0
  %v1260 = vsel %vm224, %v1234, 0
  %v1263 = vsel %vm224, %v1235, 0
  %v1266 = vsel %vm224, %v1236, 0
  %v1269 = vsel %vm224, %v1237, 0
  %v1272 = vsel %vm224, %v1238, 0
  %v1275 = vsel %vm224, %v1239, 0
  %v1278 = vsel %vm224, %v1240, 0
  %1280 = vmatprep.subr.mxu0 0.0
  %1281 = vmatpush1.msra.mxu0 %v1241
  %1282 = vmatprep.subr.mxu0 0.0
  %1283 = vmatpush1.msra.mxu0 %v1242
  %1284 = vmatprep.subr.mxu0 0.0
  %1285 = vmatpush1.msra.mxu0 %v1243
  %1286 = vmatprep.subr.mxu0 0.0
  %1287 = vmatpush1.msra.mxu0 %v1244
  %1288 = vmatprep.subr.mxu0 0.0
  %1289 = vmatpush1.msra.mxu0 %v1245
  %1290 = vmatprep.subr.mxu0 0.0
  %1291 = vmatpush1.msra.mxu0 %v1246
  %1292 = vmatprep.subr.mxu0 0.0
  %1293 = vmatpush1.msra.mxu0 %v1247
  %1294 = vmatprep.subr.mxu0 0.0
  %1295 = vmatpush1.msra.mxu0 %v1248
  %1296 = vmatprep.subr.mxu0 0.0
  %1297 = vmatpush1.msra.mxu0 0.0
  %1298 = vmatprep.subr.mxu0 0.0
  %1299 = vmatpush1.msra.mxu0 0.0
  %1300 = vmatprep.subr.mxu0 0.0
  %1301 = vmatpush1.msra.mxu0 0.0
  %1302 = vmatprep.subr.mxu0 0.0
  %1303 = vmatpush1.msra.mxu0 0.0
  %1304 = vmatprep.subr.mxu0 0.0
  %1305 = vmatpush1.msra.mxu0 0.0
  %1306 = vmatprep.subr.mxu0 0.0
  %1307 = vmatpush1.msra.mxu0 0.0
  %1308 = vmatprep.subr.mxu0 0.0
  %1309 = vmatpush1.msra.mxu0 0.0
  %1310 = vmatprep.subr.mxu0 0.0
  %1311 = vmatpush1.msra.mxu0 0.0
  %1312 = vmatprep.subr.mxu0 0.0
  %1313 = vmatpush1.msra.mxu0 0.0
  %1314 = vmatprep.subr.mxu0 0.0
  %1315 = vmatpush1.msra.mxu0 0.0
  %1316 = vmatprep.subr.mxu0 0.0
  %1317 = vmatpush1.msra.mxu0 0.0
  %1318 = vmatprep.subr.mxu0 0.0
  %1319 = vmatpush1.msra.mxu0 0.0
  %1320 = vmatprep.subr.mxu0 0.0
  %1321 = vmatpush1.msra.mxu0 0.0
  %1322 = vmatprep.subr.mxu0 0.0
  %1323 = vmatpush1.msra.mxu0 0.0
  %1324 = vmatprep.subr.mxu0 0.0
  %1325 = vmatpush1.msra.mxu0 0.0
  %1326 = vmatprep.subr.mxu0 0.0
  %1327 = vmatpush1.msra.mxu0 0.0
  %1328 = vmatprep.subr.mxu0 0.0
  %1329 = vmatpush1.msra.mxu0 0.0
  %1330 = vmatprep.subr.mxu0 0.0
  %1331 = vmatpush1.msra.mxu0 0.0
  %1332 = vmatprep.subr.mxu0 0.0
  %1333 = vmatpush1.msra.mxu0 0.0
  %1334 = vmatprep.subr.mxu0 0.0
  %1335 = vmatpush1.msra.mxu0 0.0
  %1336 = vmatprep.subr.mxu0 0.0
  %1337 = vmatpush1.msra.mxu0 0.0
  %1338 = vmatprep.subr.mxu0 0.0
  %1339 = vmatpush1.msra.mxu0 0.0
  %1340 = vmatprep.subr.mxu0 0.0
  %1341 = vmatpush1.msra.mxu0 0.0
  %1342 = vmatprep.subr.mxu0 0.0
  %1343 = vmatpush1.msra.mxu0 0.0
  %1344 = vmatprep.mubr.f32.mxu0 0.0
  %1345 = vmatmul.mubr.f32.gmra.mrb[0].mxu0 %v1257
  %v1346 = vpop.f32.mrb[0].mxu0
  %v1347 = vadd.f32 %v1254, %v1346
  %v1348 = vpop.f32.mrb[0].mxu0
  %1349 = vmatprep.mubr.f32.mxu0 0.0
  %1350 = vmatmul.mubr.f32.gmra.mrb[0].mxu0 %v1260
  %v1351 = vpop.f32.mrb[0].mxu0
  %v1352 = vadd.f32 %v1254, %v1351
  %v1353 = vpop.f32.mrb[0].mxu0
  %1354 = vmatprep.mubr.f32.mxu0 0.0
  %1355 = vmatmul.mubr.f32.gmra.mrb[0].mxu0 %v1263
  %v1356 = vpop.f32.mrb[0].mxu0
  %v1357 = vadd.f32 %v1254, %v1356
  %v1358 = vpop.f32.mrb[0].mxu0
  %1359 = vmatprep.mubr.f32.mxu0 0.0
  %1360 = vmatmul.mubr.f32.gmra.mrb[0].mxu0 %v1266
  %v1361 = vpop.f32.mrb[0].mxu0
  %v1362 = vadd.f32 %v1254, %v1361
  %v1363 = vpop.f32.mrb[0].mxu0
  %1364 = vmatprep.mubr.f32.mxu0 0.0
  %1365 = vmatmul.mubr.f32.gmra.mrb[0].mxu0 %v1269
  %v1366 = vpop.f32.mrb[0].mxu0
  %v1367 = vadd.f32 %v1254, %v1366
  %v1368 = vpop.f32.mrb[0].mxu0
  %1369 = vmatprep.mubr.f32.mxu0 0.0
  %1370 = vmatmul.mubr.f32.gmra.mrb[0].mxu0 %v1272
  %v1371 = vpop.f32.mrb[0].mxu0
  %v1372 = vadd.f32 %v1254, %v1371
  %v1373 = vpop.f32.mrb[0].mxu0
  %1374 = vmatprep.mubr.f32.mxu0 0.0
  %1375 = vmatmul.mubr.f32.gmra.mrb[0].mxu0 %v1275
  %v1376 = vpop.f32.mrb[0].mxu0
  %v1377 = vadd.f32 %v1254, %v1376
  %v1378 = vpop.f32.mrb[0].mxu0
  %1379 = vmatprep.mubr.f32.mxu0 0.0
  %1380 = vmatmul.mubr.f32.gmra.mrb[0].mxu0 %v1278
  %v1381 = vpop.f32.mrb[0].mxu0
  %v1382 = vadd.f32 %v1254, %v1381
  %v1383 = vpop.f32.mrb[0].mxu0
  %1384 = vdwg.mxu0
  %1385 = vst [vmem:[%s10] sm:$0xff] %v1347
  %1386 = vst [vmem:[%s10 + $0x8] sm:$0xff] %v1352
  %1387 = vst [vmem:[%s10 + $0x10] sm:$0xff] %v1357
  %1388 = vst [vmem:[%s10 + $0x18] sm:$0xff] %v1362
  %1389 = vst [vmem:[%s10 + $0x20] sm:$0xff] %v1367
  %1390 = vst [vmem:[%s10 + $0x28] sm:$0xff] %v1372
  %1391 = vst [vmem:[%s10 + $0x30] sm:$0xff] %v1377
  %1392 = vst [vmem:[%s10 + $0x38] sm:$0xff] %v1382
  %1393 = vst.msk [vmem:[%s11] sm:$0xff] %vm224, %v1230
  %1395 = vrot.lane.b32.xlu0 %v1225, 64
  %v1396 = vpop.permute.xlu0 %1395
  %1398 = vst.msk [vmem:[%s12] sm:$0xff] %vm224, %v1396
  // Predicated region
  $region42: #{qnet_forward.1} parent=0 // pred_check
    _
  $region43: #{qnet_forward.1} parent=0 // pred_check_branch
    %1400 = sbr.rel (0) target = $region45
  $region44: #{qnet_forward.1} parent=0 // pred_region
    _
  $region45: #{qnet_forward.1} parent=0 // pred_fallthru
    _
  // Predicated region
  $region46: #{qnet_forward.1} parent=0 // pred_check
    _
  $region47: #{qnet_forward.1} parent=0 // pred_check_branch
    %1402 = sbr.rel (0) target = $region49
  $region48: #{qnet_forward.1} parent=0 // pred_region
    _
  $region49: #{qnet_forward.1} parent=0 // pred_fallthru
    _
  // Predicated region
  $region50: #{qnet_forward.1} parent=0 // pred_check
    _
  $region51: #{qnet_forward.1} parent=0 // pred_check_branch
    %1404 = sbr.rel (0) target = $region53
  $region52: #{qnet_forward.1} parent=0 // pred_region
    _
  $region53: #{qnet_forward.1} parent=0 // pred_fallthru
    _
  // Predicated region
  $region54: #{qnet_forward.1} parent=0 // pred_check
    _
  $region55: #{qnet_forward.1} parent=0 // pred_check_branch
    %1406 = sbr.rel (0) target = $region57
  $region56: #{qnet_forward.1} parent=0 // pred_region
    _
  $region57: #{qnet_forward.1} parent=0 // pred_fallthru
    _
  // Predicated region
  $region58: #{qnet_forward.1} parent=0 // pred_check
    _
  $region59: #{qnet_forward.1} parent=0 // pred_check_branch
    %1408 = sbr.rel (0) target = $region61
  $region60: #{qnet_forward.1} parent=0 // pred_region
    _
  $region61: #{qnet_forward.1} parent=0 // pred_fallthru
    _
  // Predicated region
  $region62: #{qnet_forward.1} parent=0 // pred_check
    _
  $region63: #{qnet_forward.1} parent=0 // pred_check_branch
    %1410 = sbr.rel (0) target = $region65
  $region64: #{qnet_forward.1} parent=0 // pred_region
    _
  $region65: #{qnet_forward.1} parent=0 // pred_fallthru
    _

</llo_original>
